<compile_context>
chip_gen: v5e
topology: v5e:2x2
jax: 0.10.0
libtpu: 0.0.40
codegen_flags: <defaults>
</compile_context>

<pallas_src>
import jax
import jax.numpy as jnp
from jax.experimental import pallas as pl
from jax.experimental.pallas import tpu as pltpu


# ----------------------------------------------------------------------------
# Plain-JAX grouping glue (matches the torch helper functions)
# ----------------------------------------------------------------------------
def get_dists(points1, points2):
    # points1: (B, M, C), points2: (B, N, C)
    d = (jnp.sum(points1 ** 2, axis=-1)[:, :, None]
         + jnp.sum(points2 ** 2, axis=-1)[:, None, :]
         - 2.0 * jnp.einsum("bmc,bnc->bmn", points1, points2))
    d = jnp.where(d < 0, jnp.full_like(d, 1e-7), d)
    return jnp.sqrt(d).astype(jnp.float32)


def ball_query(xyz, new_xyz, radius, K):
    B, N, _ = xyz.shape
    M = new_xyz.shape[1]
    grouped_inds = jnp.broadcast_to(
        jnp.arange(N, dtype=jnp.int32)[None, None, :], (B, M, N))
    dists = get_dists(new_xyz, xyz)
    grouped_inds = jnp.where(dists > radius, N, grouped_inds)
    grouped_inds = jnp.sort(grouped_inds, axis=-1)[:, :, :K]
    grouped_min = jnp.broadcast_to(grouped_inds[:, :, 0:1], (B, M, K))
    grouped_inds = jnp.where(grouped_inds == N, grouped_min, grouped_inds)
    return grouped_inds


def fps(xyz, M):
    # TODO(synk): torch fps starts from torch.randint; fixed to index 0 here
    # for determinism (everything else matches the reference algorithm).
    B, N, _ = xyz.shape
    bidx = jnp.arange(B)

    def body(i, carry):
        dists, inds, centroids = carry
        centroids = centroids.at[:, i].set(inds)
        cur_point = xyz[bidx, inds, :]                              # (B, 3)
        cur_dist = get_dists(cur_point[:, None, :], xyz)[:, 0, :]   # (B, N)
        dists = jnp.minimum(dists, cur_dist)
        inds = jnp.argmax(dists, axis=1).astype(jnp.int32)
        return dists, inds, centroids

    dists0 = jnp.full((B, N), 1e5, dtype=jnp.float32)
    inds0 = jnp.zeros((B,), dtype=jnp.int32)
    cent0 = jnp.zeros((B, M), dtype=jnp.int32)
    _, _, centroids = jax.lax.fori_loop(0, M, body, (dists0, inds0, cent0))
    return centroids                                                # (B, M)


def gather_points(points, inds):
    # points: (B, N, C); inds: (B, M) or (B, M, K)
    return jax.vmap(lambda p, i: p[i])(points, inds)


def sample_and_group(xyz, points, M, radius, K, use_xyz=True):
    new_xyz = gather_points(xyz, fps(xyz, M))                  # (B, M, 3)
    grouped_inds = ball_query(xyz, new_xyz, radius, K)         # (B, M, K)
    grouped_xyz = gather_points(xyz, grouped_inds)             # (B, M, K, 3)
    grouped_xyz = grouped_xyz - new_xyz[:, :, None, :]
    if points is not None:
        grouped_points = gather_points(points, grouped_inds)   # (B, M, K, C)
        if use_xyz:
            new_points = jnp.concatenate(
                [grouped_xyz.astype(jnp.float32),
                 grouped_points.astype(jnp.float32)], axis=-1)
        else:
            new_points = grouped_points
    else:
        new_points = grouped_xyz
    return new_xyz, new_points, grouped_inds, grouped_xyz


def sample_and_group_all(xyz, points, use_xyz=True):
    B, M, C = xyz.shape
    new_xyz = jnp.zeros((B, 1, C), dtype=xyz.dtype)
    grouped_inds = jnp.broadcast_to(jnp.arange(M)[None, None, :], (B, 1, M))
    grouped_xyz = xyz.reshape(B, 1, M, C)
    if points is not None:
        if use_xyz:
            new_points = jnp.concatenate(
                [xyz.astype(jnp.float32), points.astype(jnp.float32)], axis=2)
        else:
            new_points = points
        new_points = new_points[:, None, :, :]
    else:
        new_points = grouped_xyz
    return new_xyz, new_points, grouped_inds, grouped_xyz


# ----------------------------------------------------------------------------
# VMEM budgeting + tiling selection
# ----------------------------------------------------------------------------
def _roundup(x, m):
    return ((x + m - 1) // m) * m


def _vmem_cost_bytes(tile_p, kc, c0, mlp, out_bytes):
    """Conservative per-grid-step VMEM footprint of the kernel."""
    c0_t = _roundup(c0, 16)                       # bf16 sublane tile of the input
    cmax_t = _roundup(max(mlp), 8)
    clast_t = _roundup(mlp[-1], 8)
    x_buf = 2 * kc * c0_t * tile_p * 2            # double-buffered bf16 input block
    act = 2 * cmax_t * tile_p * 4                 # f32 activations inside the layer loop
    acc = clast_t * tile_p * 4                    # f32 pool-accumulator scratch
    out_buf = 2 * clast_t * tile_p * out_bytes    # double-buffered output block
    params = 0                                    # weights/biases (counted double-buffered)
    c_in = c0
    for c_out in mlp:
        params += 2 * (_roundup(c_out, 16) * _roundup(c_in, 128) * 2)   # Wt bf16
        params += 2 * (_roundup(c_out, 8) * 128 * 4)                    # b  f32
        c_in = c_out
    return x_buf + act + acc + out_buf + params


def _vmem_budget_bytes():
    """Generation-aware usable VMEM (v7x: 64 MiB physical; v5e/v6e: 128 MiB)."""
    cap = 64 * 1024 * 1024
    try:
        info = pltpu.get_tpu_info()
        cap = int(getattr(info, "vmem_capacity_bytes", cap) or cap)
    except Exception:
        pass  # unknown platform -> assume the smallest (v7x-safe) capacity
    return min(int(cap * 0.75), 100 * 1024 * 1024)


def _choose_tiling(P, K, c0, mlp, out_bytes, budget):
    """Pick the largest TILE_P (multiple of 128, >=2 grid steps over P when
    P > 128) and the largest K-chunk (divisor of K, capped at 16) that fit."""
    if P <= 128:
        tiles = [128]
        # TODO(synk): group_all / tiny-P collapses grid_p to 1; a second
        # "parallel" partial-pool axis over K would be needed to keep both
        # v7x TensorCores busy in that regime.
    else:
        cap = min(_roundup(-(-P // 2), 128), 2048)
        tiles = list(range(cap, 0, -128))
    k_chunks = [d for d in range(min(K, 16), 0, -1) if K % d == 0]
    for tp in tiles:
        for kc in k_chunks:
            if _vmem_cost_bytes(tp, kc, c0, mlp, out_bytes) <= budget:
                return tp, kc
    return 128, 1


# ----------------------------------------------------------------------------
# Pallas kernel: per grid step, KC neighbour slices of (C0, TILE_P) flow
# through the BN-folded MLP as (Cout, Cin) @ (Cin, TILE_P) MXU matmuls, with a
# running K-pool into an f32 VMEM scratch (accumulator pattern over grid_k).
# ----------------------------------------------------------------------------
def make_sa_mlp_kernel(num_layers, kc, k_total, pooling):
    def kernel(x_ref, *refs):
        acc_ref = refs[-1]                    # (c_last, TILE_P) f32 scratch
        out_ref = refs[-2]                    # (c_last, TILE_P) output block
        params = refs[:-2]                    # (Wt0, b0, Wt1, b1, ...)
        kidx = pl.program_id(1)

        @pl.when(kidx == 0)
        def _():
            # Post-ReLU values are >= 0, so 0 is a valid identity for both
            # the running max and the running sum.
            acc_ref[...] = jnp.zeros_like(acc_ref)

        for kk in range(kc):
            h = x_ref[kk]                              # (C_in, TILE_P) bf16
            for l in range(num_layers):
                wt = params[2 * l][...]                # (C_out, C_in) bf16, BN folded
                b = params[2 * l + 1][...]             # (C_out, 1) f32
                z = jnp.dot(wt, h, preferred_element_type=jnp.float32)
                z = jnp.maximum(z + b, 0.0)            # bias + ReLU in f32
                h = z.astype(jnp.bfloat16) if l < num_layers - 1 else z
            if pooling == "avg":
                acc_ref[...] = acc_ref[...] + h
            else:
                acc_ref[...] = jnp.maximum(acc_ref[...], h)

        @pl.when(kidx == pl.num_programs(1) - 1)
        def _():
            res = acc_ref[...]
            if pooling == "avg":
                res = res * (1.0 / k_total)
            out_ref[...] = res.astype(out_ref.dtype)

    return kernel


class PointNetSAModule1:
    def __init__(self, M, radius, K, in_channels, mlp, group_all,
                 bn=True, pooling="max", use_xyz=True, key=None):
        self.M, self.radius, self.K = M, radius, K
        self.mlp = list(mlp)
        self.group_all = group_all
        self.bn = bn
        self.pooling = pooling
        self.use_xyz = use_xyz
        if key is None:
            key = jax.random.PRNGKey(0)

        # Deterministic parameter init (Conv2d 1x1 no-bias + BatchNorm2d).
        # BN is applied in eval mode (running_mean=0, running_var=1); its
        # per-channel scale is folded into the conv weight (W' = W*s) and its
        # shift becomes the per-channel bias added in the kernel.
        # TODO(synk): train-mode BatchNorm (batch statistics over B*M*K) would
        # need an extra cross-tile reduction pass; not implemented.
        self.weights = []   # bf16, BN scale folded, TRANSPOSED shape (Cout, Cin)
        self.biases = []    # f32, shape (Cout, 1)
        c_in = in_channels
        for c_out in self.mlp:
            key, wk, gk, bk = jax.random.split(key, 4)
            bound = 1.0 / (c_in ** 0.5)          # kaiming-uniform fan_in, 1x1 conv
            w = jax.random.uniform(wk, (c_in, c_out), jnp.float32, -bound, bound)
            if self.bn:
                gamma = jax.random.uniform(gk, (c_out,), jnp.float32, 0.5, 1.5)
                beta = jax.random.uniform(bk, (c_out,), jnp.float32, -0.5, 0.5)
                running_mean = jnp.zeros((c_out,), jnp.float32)
                running_var = jnp.ones((c_out,), jnp.float32)
                eps = 1e-5
                scale = gamma / jnp.sqrt(running_var + eps)
                bias = beta - running_mean * scale
            else:
                scale = jnp.ones((c_out,), jnp.float32)
                bias = jnp.zeros((c_out,), jnp.float32)
            wt = (w * scale[None, :]).T          # (Cout, Cin), BN folded
            self.weights.append(wt.astype(jnp.bfloat16))
            self.biases.append(bias.reshape(c_out, 1).astype(jnp.float32))
            c_in = c_out

    def __call__(self, xyz, points):
        if self.group_all:
            new_xyz, new_points, _, _ = sample_and_group_all(xyz, points, self.use_xyz)
        else:
            new_xyz, new_points, _, _ = sample_and_group(
                xyz, points, self.M, self.radius, self.K, self.use_xyz)

        B, M, K, C0 = new_points.shape
        P = B * M
        c_last = self.mlp[-1]
        num_layers = len(self.mlp)
        out_dtype = jnp.float32

        budget = _vmem_budget_bytes()
        TILE_P, KC = _choose_tiling(
            P, K, C0, self.mlp, jnp.dtype(out_dtype).itemsize, budget)
        grid_p = -(-P // TILE_P)
        grid_k = K // KC
        P_pad = grid_p * TILE_P

        # bf16 cast BEFORE the repack (halves the transpose traffic), then
        # channels-on-sublanes / points-on-lanes layout (K, C0, P_pad).
        x = new_points.astype(jnp.bfloat16)
        x = jnp.transpose(x, (2, 3, 0, 1)).reshape(K, C0, P)
        if P_pad != P:
            x = jnp.pad(x, ((0, 0), (0, 0), (0, P_pad - P)))

        kernel = make_sa_mlp_kernel(num_layers, KC, K, self.pooling)

        in_specs = [pl.BlockSpec((KC, C0, TILE_P), lambda p, k: (k, 0, p))]
        args = [x]
        for wt, b in zip(self.weights, self.biases):
            # Constant operands (index_map never changes).  They are tiny and
            # counted double-buffered in the VMEM budget; single-buffering
            # them (pl.Buffered(1)) would reclaim a little extra headroom.
            in_specs.append(pl.BlockSpec(wt.shape, lambda p, k: (0, 0)))
            in_specs.append(pl.BlockSpec(b.shape, lambda p, k: (0, 0)))
            args += [wt, b]

        out = pl.pallas_call(
            kernel,
            out_shape=jax.ShapeDtypeStruct((c_last, P_pad), out_dtype),
            grid_spec=pltpu.PrefetchScalarGridSpec(
                num_scalar_prefetch=0,
                grid=(grid_p, grid_k),
                in_specs=in_specs,
                out_specs=pl.BlockSpec((c_last, TILE_P), lambda p, k: (0, p)),
                scratch_shapes=[pltpu.VMEM((c_last, TILE_P), jnp.float32)]),
            compiler_params=pltpu.CompilerParams(
                dimension_semantics=("parallel", "arbitrary"),
                vmem_limit_bytes=budget),
        )(*args)

        # (c_last, P) -> (B, M, c_last)  (torch output layout)
        new_points_out = jnp.transpose(out[:, :P], (1, 0)).reshape(B, M, c_last)
        return new_xyz, new_points_out


# ----------------------------------------------------------------------------
# Plain-JAX reference of the MLP + pool path (same bf16 quantization as kernel)
# ----------------------------------------------------------------------------
def mlp_pool_reference(new_points, weights_t, biases, pooling):
    # weights_t[l]: (Cout, Cin) bf16 (BN folded); biases[l]: (Cout, 1) f32
    h = new_points.astype(jnp.bfloat16).astype(jnp.float32)   # (B, M, K, C0)
    n = len(weights_t)
    for l, (wt, b) in enumerate(zip(weights_t, biases)):
        h = jnp.einsum("bmkc,dc->bmkd", h, wt.astype(jnp.float32))
        h = jnp.maximum(h + b.reshape(1, 1, 1, -1), 0.0)
        if l < n - 1:
            h = h.astype(jnp.bfloat16).astype(jnp.float32)
    if pooling == "avg":
        return jnp.mean(h, axis=2)
    return jnp.max(h, axis=2)


if __name__ == "__main__":
    key = jax.random.PRNGKey(0)
    kx, kp, kw = jax.random.split(key, 3)

    B, N, C = 2, 64, 4        # batch, points per cloud, extra feature channels
    M, K = 16, 8              # sampled centroids, neighbours per ball
    xyz = jax.random.uniform(kx, (B, N, 3), dtype=jnp.float32)
    points = jax.random.normal(kp, (B, N, C), dtype=jnp.float32)

    module = PointNetSAModule1(
        M=M, radius=0.4, K=K, in_channels=C + 3, mlp=[16, 32],
        group_all=False, bn=True, pooling="max", use_xyz=True, key=kw)

    new_xyz, new_points_out = module(xyz, points)
    jax.block_until_ready((new_xyz, new_points_out))

    assert new_xyz.shape == (B, M, 3)
    assert new_points_out.shape == (B, M, 32)
    assert bool(jnp.all(jnp.isfinite(new_points_out)))

    # Structural correctness check against the plain-JAX reference.
    _, grouped, _, _ = sample_and_group(xyz, points, M, 0.4, K, True)
    ref = mlp_pool_reference(grouped, module.weights, module.biases, "max")
    assert bool(jnp.allclose(new_points_out, ref, rtol=3e-2, atol=3e-2))

    print("KERNEL_OK")
</pallas_src>

<mosaic_0001>
module attributes {stable_mosaic.version = 11 : i64} {
  func.func @kernel(%arg0: i32, %arg1: i32, %arg2: memref<8x7x128xbf16, #tpu.memory_space<vmem>>, %arg3: memref<16x7xbf16, #tpu.memory_space<vmem>>, %arg4: memref<16x1xf32, #tpu.memory_space<vmem>>, %arg5: memref<32x16xbf16, #tpu.memory_space<vmem>>, %arg6: memref<32x1xf32, #tpu.memory_space<vmem>>, %arg7: memref<32x128xf32, #tpu.memory_space<vmem>>, %arg8: memref<32x128xf32, #tpu.memory_space<vmem>>) attributes {dimension_semantics = [#tpu.dimension_semantics<parallel>, #tpu.dimension_semantics<arbitrary>], iteration_bounds = array<i64: 1, 1>, scalar_prefetch = 0 : i64, scratch_operands = 1 : i64, tpu.core_type = #tpu.core_type<tc>, window_params = [{transform_indices = @transform_0, window_bounds = array<i64: 8, 7, 128>}, {pipeline_mode = #tpu.pipeline_mode<synchronous>, transform_indices = @transform_1, window_bounds = array<i64: 16, 7>}, {pipeline_mode = #tpu.pipeline_mode<synchronous>, transform_indices = @transform_2, window_bounds = array<i64: 16, 1>}, {pipeline_mode = #tpu.pipeline_mode<synchronous>, transform_indices = @transform_3, window_bounds = array<i64: 32, 16>}, {pipeline_mode = #tpu.pipeline_mode<synchronous>, transform_indices = @transform_4, window_bounds = array<i64: 32, 1>}, {transform_indices = @transform_5, window_bounds = array<i64: 32, 128>}]} {
    %c0_i32 = arith.constant 0 : i32
    %0 = arith.cmpi eq, %arg1, %c0_i32 : i32
    %1 = arith.extui %0 : i1 to i32
    %c0_i32_0 = arith.constant 0 : i32
    %2 = arith.cmpi ne, %1, %c0_i32_0 : i32
    scf.if %2 {
      %cst_146 = arith.constant 0.000000e+00 : f32
      %166 = vector.broadcast %cst_146 : f32 to vector<32x128xf32>
      %c0_147 = arith.constant 0 : index
      %c0_148 = arith.constant 0 : index
      %167 = vector.load %arg8[%c0_147, %c0_148] : memref<32x128xf32, #tpu.memory_space<vmem>>, vector<32x128xf32>
      tpu.vector_store %arg8[%c0_147, %c0_148], %166 {strides = array<i32>} : memref<32x128xf32, #tpu.memory_space<vmem>>, vector<32x128xf32>,
    } else {
    }
    %c0 = arith.constant 0 : index
    %c0_1 = arith.constant 0 : index
    %c0_2 = arith.constant 0 : index
    %3 = vector.load %arg2[%c0, %c0_1, %c0_2] : memref<8x7x128xbf16, #tpu.memory_space<vmem>>, vector<1x7x128xbf16>
    %4 = vector.shape_cast %3 : vector<1x7x128xbf16> to vector<7x128xbf16>
    %c0_3 = arith.constant 0 : index
    %c0_4 = arith.constant 0 : index
    %5 = vector.load %arg3[%c0_3, %c0_4] : memref<16x7xbf16, #tpu.memory_space<vmem>>, vector<16x7xbf16>
    %c0_5 = arith.constant 0 : index
    %c0_6 = arith.constant 0 : index
    %6 = vector.load %arg4[%c0_5, %c0_6] : memref<16x1xf32, #tpu.memory_space<vmem>>, vector<16x1xf32>
    %cst = arith.constant dense<0.000000e+00> : vector<16x128xf32>
    %7 = tpu.matmul %5, %4, %cst {dimension_numbers = #tpu.dot_dimension_numbers<[1], [0], [0], [1], [0, 0, 1, 1], [], []>} : vector<16x7xbf16>, vector<7x128xbf16>, vector<16x128xf32> -> vector<16x128xf32>
    %8 = vector.broadcast %6 : vector<16x1xf32> to vector<16x128xf32>
    %9 = arith.addf %7, %8 : vector<16x128xf32>
    %cst_7 = arith.constant 0.000000e+00 : f32
    %10 = vector.broadcast %cst_7 : f32 to vector<16x128xf32>
    %11 = arith.maximumf %9, %10 : vector<16x128xf32>
    %12 = arith.truncf %11 : vector<16x128xf32> to vector<16x128xbf16>
    %c0_8 = arith.constant 0 : index
    %c0_9 = arith.constant 0 : index
    %13 = vector.load %arg5[%c0_8, %c0_9] : memref<32x16xbf16, #tpu.memory_space<vmem>>, vector<32x16xbf16>
    %c0_10 = arith.constant 0 : index
    %c0_11 = arith.constant 0 : index
    %14 = vector.load %arg6[%c0_10, %c0_11] : memref<32x1xf32, #tpu.memory_space<vmem>>, vector<32x1xf32>
    %cst_12 = arith.constant dense<0.000000e+00> : vector<32x128xf32>
    %15 = tpu.matmul %13, %12, %cst_12 {dimension_numbers = #tpu.dot_dimension_numbers<[1], [0], [0], [1], [0, 0, 1, 1], [], []>} : vector<32x16xbf16>, vector<16x128xbf16>, vector<32x128xf32> -> vector<32x128xf32>
    %16 = vector.broadcast %14 : vector<32x1xf32> to vector<32x128xf32>
    %17 = arith.addf %15, %16 : vector<32x128xf32>
    %cst_13 = arith.constant 0.000000e+00 : f32
    %18 = vector.broadcast %cst_13 : f32 to vector<32x128xf32>
    %19 = arith.maximumf %17, %18 : vector<32x128xf32>
    %c0_14 = arith.constant 0 : index
    %c0_15 = arith.constant 0 : index
    %20 = vector.load %arg8[%c0_14, %c0_15] : memref<32x128xf32, #tpu.memory_space<vmem>>, vector<32x128xf32>
    %21 = arith.maximumf %20, %19 : vector<32x128xf32>
    %c0_16 = arith.constant 0 : index
    %c0_17 = arith.constant 0 : index
    %22 = vector.load %arg8[%c0_16, %c0_17] : memref<32x128xf32, #tpu.memory_space<vmem>>, vector<32x128xf32>
    tpu.vector_store %arg8[%c0_16, %c0_17], %21 {strides = array<i32>} : memref<32x128xf32, #tpu.memory_space<vmem>>, vector<32x128xf32>,
    %c1 = arith.constant 1 : index
    %c0_18 = arith.constant 0 : index
    %c0_19 = arith.constant 0 : index
    %23 = vector.load %arg2[%c1, %c0_18, %c0_19] : memref<8x7x128xbf16, #tpu.memory_space<vmem>>, vector<1x7x128xbf16>
    %24 = vector.shape_cast %23 : vector<1x7x128xbf16> to vector<7x128xbf16>
    %c0_20 = arith.constant 0 : index
    %c0_21 = arith.constant 0 : index
    %25 = vector.load %arg3[%c0_20, %c0_21] : memref<16x7xbf16, #tpu.memory_space<vmem>>, vector<16x7xbf16>
    %c0_22 = arith.constant 0 : index
    %c0_23 = arith.constant 0 : index
    %26 = vector.load %arg4[%c0_22, %c0_23] : memref<16x1xf32, #tpu.memory_space<vmem>>, vector<16x1xf32>
    %cst_24 = arith.constant dense<0.000000e+00> : vector<16x128xf32>
    %27 = tpu.matmul %25, %24, %cst_24 {dimension_numbers = #tpu.dot_dimension_numbers<[1], [0], [0], [1], [0, 0, 1, 1], [], []>} : vector<16x7xbf16>, vector<7x128xbf16>, vector<16x128xf32> -> vector<16x128xf32>
    %28 = vector.broadcast %26 : vector<16x1xf32> to vector<16x128xf32>
    %29 = arith.addf %27, %28 : vector<16x128xf32>
    %cst_25 = arith.constant 0.000000e+00 : f32
    %30 = vector.broadcast %cst_25 : f32 to vector<16x128xf32>
    %31 = arith.maximumf %29, %30 : vector<16x128xf32>
    %32 = arith.truncf %31 : vector<16x128xf32> to vector<16x128xbf16>
    %c0_26 = arith.constant 0 : index
    %c0_27 = arith.constant 0 : index
    %33 = vector.load %arg5[%c0_26, %c0_27] : memref<32x16xbf16, #tpu.memory_space<vmem>>, vector<32x16xbf16>
    %c0_28 = arith.constant 0 : index
    %c0_29 = arith.constant 0 : index
    %34 = vector.load %arg6[%c0_28, %c0_29] : memref<32x1xf32, #tpu.memory_space<vmem>>, vector<32x1xf32>
    %cst_30 = arith.constant dense<0.000000e+00> : vector<32x128xf32>
    %35 = tpu.matmul %33, %32, %cst_30 {dimension_numbers = #tpu.dot_dimension_numbers<[1], [0], [0], [1], [0, 0, 1, 1], [], []>} : vector<32x16xbf16>, vector<16x128xbf16>, vector<32x128xf32> -> vector<32x128xf32>
    %36 = vector.broadcast %34 : vector<32x1xf32> to vector<32x128xf32>
    %37 = arith.addf %35, %36 : vector<32x128xf32>
    %cst_31 = arith.constant 0.000000e+00 : f32
    %38 = vector.broadcast %cst_31 : f32 to vector<32x128xf32>
    %39 = arith.maximumf %37, %38 : vector<32x128xf32>
    %c0_32 = arith.constant 0 : index
    %c0_33 = arith.constant 0 : index
    %40 = vector.load %arg8[%c0_32, %c0_33] : memref<32x128xf32, #tpu.memory_space<vmem>>, vector<32x128xf32>
    %41 = arith.maximumf %40, %39 : vector<32x128xf32>
    %c0_34 = arith.constant 0 : index
    %c0_35 = arith.constant 0 : index
    %42 = vector.load %arg8[%c0_34, %c0_35] : memref<32x128xf32, #tpu.memory_space<vmem>>, vector<32x128xf32>
    tpu.vector_store %arg8[%c0_34, %c0_35], %41 {strides = array<i32>} : memref<32x128xf32, #tpu.memory_space<vmem>>, vector<32x128xf32>,
    %c2 = arith.constant 2 : index
    %c0_36 = arith.constant 0 : index
    %c0_37 = arith.constant 0 : index
    %43 = vector.load %arg2[%c2, %c0_36, %c0_37] : memref<8x7x128xbf16, #tpu.memory_space<vmem>>, vector<1x7x128xbf16>
    %44 = vector.shape_cast %43 : vector<1x7x128xbf16> to vector<7x128xbf16>
    %c0_38 = arith.constant 0 : index
    %c0_39 = arith.constant 0 : index
    %45 = vector.load %arg3[%c0_38, %c0_39] : memref<16x7xbf16, #tpu.memory_space<vmem>>, vector<16x7xbf16>
    %c0_40 = arith.constant 0 : index
    %c0_41 = arith.constant 0 : index
    %46 = vector.load %arg4[%c0_40, %c0_41] : memref<16x1xf32, #tpu.memory_space<vmem>>, vector<16x1xf32>
    %cst_42 = arith.constant dense<0.000000e+00> : vector<16x128xf32>
    %47 = tpu.matmul %45, %44, %cst_42 {dimension_numbers = #tpu.dot_dimension_numbers<[1], [0], [0], [1], [0, 0, 1, 1], [], []>} : vector<16x7xbf16>, vector<7x128xbf16>, vector<16x128xf32> -> vector<16x128xf32>
    %48 = vector.broadcast %46 : vector<16x1xf32> to vector<16x128xf32>
    %49 = arith.addf %47, %48 : vector<16x128xf32>
    %cst_43 = arith.constant 0.000000e+00 : f32
    %50 = vector.broadcast %cst_43 : f32 to vector<16x128xf32>
    %51 = arith.maximumf %49, %50 : vector<16x128xf32>
    %52 = arith.truncf %51 : vector<16x128xf32> to vector<16x128xbf16>
    %c0_44 = arith.constant 0 : index
    %c0_45 = arith.constant 0 : index
    %53 = vector.load %arg5[%c0_44, %c0_45] : memref<32x16xbf16, #tpu.memory_space<vmem>>, vector<32x16xbf16>
    %c0_46 = arith.constant 0 : index
    %c0_47 = arith.constant 0 : index
    %54 = vector.load %arg6[%c0_46, %c0_47] : memref<32x1xf32, #tpu.memory_space<vmem>>, vector<32x1xf32>
    %cst_48 = arith.constant dense<0.000000e+00> : vector<32x128xf32>
    %55 = tpu.matmul %53, %52, %cst_48 {dimension_numbers = #tpu.dot_dimension_numbers<[1], [0], [0], [1], [0, 0, 1, 1], [], []>} : vector<32x16xbf16>, vector<16x128xbf16>, vector<32x128xf32> -> vector<32x128xf32>
    %56 = vector.broadcast %54 : vector<32x1xf32> to vector<32x128xf32>
    %57 = arith.addf %55, %56 : vector<32x128xf32>
    %cst_49 = arith.constant 0.000000e+00 : f32
    %58 = vector.broadcast %cst_49 : f32 to vector<32x128xf32>
    %59 = arith.maximumf %57, %58 : vector<32x128xf32>
    %c0_50 = arith.constant 0 : index
    %c0_51 = arith.constant 0 : index
    %60 = vector.load %arg8[%c0_50, %c0_51] : memref<32x128xf32, #tpu.memory_space<vmem>>, vector<32x128xf32>
    %61 = arith.maximumf %60, %59 : vector<32x128xf32>
    %c0_52 = arith.constant 0 : index
    %c0_53 = arith.constant 0 : index
    %62 = vector.load %arg8[%c0_52, %c0_53] : memref<32x128xf32, #tpu.memory_space<vmem>>, vector<32x128xf32>
    tpu.vector_store %arg8[%c0_52, %c0_53], %61 {strides = array<i32>} : memref<32x128xf32, #tpu.memory_space<vmem>>, vector<32x128xf32>,
    %c3 = arith.constant 3 : index
    %c0_54 = arith.constant 0 : index
    %c0_55 = arith.constant 0 : index
    %63 = vector.load %arg2[%c3, %c0_54, %c0_55] : memref<8x7x128xbf16, #tpu.memory_space<vmem>>, vector<1x7x128xbf16>
    %64 = vector.shape_cast %63 : vector<1x7x128xbf16> to vector<7x128xbf16>
    %c0_56 = arith.constant 0 : index
    %c0_57 = arith.constant 0 : index
    %65 = vector.load %arg3[%c0_56, %c0_57] : memref<16x7xbf16, #tpu.memory_space<vmem>>, vector<16x7xbf16>
    %c0_58 = arith.constant 0 : index
    %c0_59 = arith.constant 0 : index
    %66 = vector.load %arg4[%c0_58, %c0_59] : memref<16x1xf32, #tpu.memory_space<vmem>>, vector<16x1xf32>
    %cst_60 = arith.constant dense<0.000000e+00> : vector<16x128xf32>
    %67 = tpu.matmul %65, %64, %cst_60 {dimension_numbers = #tpu.dot_dimension_numbers<[1], [0], [0], [1], [0, 0, 1, 1], [], []>} : vector<16x7xbf16>, vector<7x128xbf16>, vector<16x128xf32> -> vector<16x128xf32>
    %68 = vector.broadcast %66 : vector<16x1xf32> to vector<16x128xf32>
    %69 = arith.addf %67, %68 : vector<16x128xf32>
    %cst_61 = arith.constant 0.000000e+00 : f32
    %70 = vector.broadcast %cst_61 : f32 to vector<16x128xf32>
    %71 = arith.maximumf %69, %70 : vector<16x128xf32>
    %72 = arith.truncf %71 : vector<16x128xf32> to vector<16x128xbf16>
    %c0_62 = arith.constant 0 : index
    %c0_63 = arith.constant 0 : index
    %73 = vector.load %arg5[%c0_62, %c0_63] : memref<32x16xbf16, #tpu.memory_space<vmem>>, vector<32x16xbf16>
    %c0_64 = arith.constant 0 : index
    %c0_65 = arith.constant 0 : index
    %74 = vector.load %arg6[%c0_64, %c0_65] : memref<32x1xf32, #tpu.memory_space<vmem>>, vector<32x1xf32>
    %cst_66 = arith.constant dense<0.000000e+00> : vector<32x128xf32>
    %75 = tpu.matmul %73, %72, %cst_66 {dimension_numbers = #tpu.dot_dimension_numbers<[1], [0], [0], [1], [0, 0, 1, 1], [], []>} : vector<32x16xbf16>, vector<16x128xbf16>, vector<32x128xf32> -> vector<32x128xf32>
    %76 = vector.broadcast %74 : vector<32x1xf32> to vector<32x128xf32>
    %77 = arith.addf %75, %76 : vector<32x128xf32>
    %cst_67 = arith.constant 0.000000e+00 : f32
    %78 = vector.broadcast %cst_67 : f32 to vector<32x128xf32>
    %79 = arith.maximumf %77, %78 : vector<32x128xf32>
    %c0_68 = arith.constant 0 : index
    %c0_69 = arith.constant 0 : index
    %80 = vector.load %arg8[%c0_68, %c0_69] : memref<32x128xf32, #tpu.memory_space<vmem>>, vector<32x128xf32>
    %81 = arith.maximumf %80, %79 : vector<32x128xf32>
    %c0_70 = arith.constant 0 : index
    %c0_71 = arith.constant 0 : index
    %82 = vector.load %arg8[%c0_70, %c0_71] : memref<32x128xf32, #tpu.memory_space<vmem>>, vector<32x128xf32>
    tpu.vector_store %arg8[%c0_70, %c0_71], %81 {strides = array<i32>} : memref<32x128xf32, #tpu.memory_space<vmem>>, vector<32x128xf32>,
    %c4 = arith.constant 4 : index
    %c0_72 = arith.constant 0 : index
    %c0_73 = arith.constant 0 : index
    %83 = vector.load %arg2[%c4, %c0_72, %c0_73] : memref<8x7x128xbf16, #tpu.memory_space<vmem>>, vector<1x7x128xbf16>
    %84 = vector.shape_cast %83 : vector<1x7x128xbf16> to vector<7x128xbf16>
    %c0_74 = arith.constant 0 : index
    %c0_75 = arith.constant 0 : index
    %85 = vector.load %arg3[%c0_74, %c0_75] : memref<16x7xbf16, #tpu.memory_space<vmem>>, vector<16x7xbf16>
    %c0_76 = arith.constant 0 : index
    %c0_77 = arith.constant 0 : index
    %86 = vector.load %arg4[%c0_76, %c0_77] : memref<16x1xf32, #tpu.memory_space<vmem>>, vector<16x1xf32>
    %cst_78 = arith.constant dense<0.000000e+00> : vector<16x128xf32>
    %87 = tpu.matmul %85, %84, %cst_78 {dimension_numbers = #tpu.dot_dimension_numbers<[1], [0], [0], [1], [0, 0, 1, 1], [], []>} : vector<16x7xbf16>, vector<7x128xbf16>, vector<16x128xf32> -> vector<16x128xf32>
    %88 = vector.broadcast %86 : vector<16x1xf32> to vector<16x128xf32>
    %89 = arith.addf %87, %88 : vector<16x128xf32>
    %cst_79 = arith.constant 0.000000e+00 : f32
    %90 = vector.broadcast %cst_79 : f32 to vector<16x128xf32>
    %91 = arith.maximumf %89, %90 : vector<16x128xf32>
    %92 = arith.truncf %91 : vector<16x128xf32> to vector<16x128xbf16>
    %c0_80 = arith.constant 0 : index
    %c0_81 = arith.constant 0 : index
    %93 = vector.load %arg5[%c0_80, %c0_81] : memref<32x16xbf16, #tpu.memory_space<vmem>>, vector<32x16xbf16>
    %c0_82 = arith.constant 0 : index
    %c0_83 = arith.constant 0 : index
    %94 = vector.load %arg6[%c0_82, %c0_83] : memref<32x1xf32, #tpu.memory_space<vmem>>, vector<32x1xf32>
    %cst_84 = arith.constant dense<0.000000e+00> : vector<32x128xf32>
    %95 = tpu.matmul %93, %92, %cst_84 {dimension_numbers = #tpu.dot_dimension_numbers<[1], [0], [0], [1], [0, 0, 1, 1], [], []>} : vector<32x16xbf16>, vector<16x128xbf16>, vector<32x128xf32> -> vector<32x128xf32>
    %96 = vector.broadcast %94 : vector<32x1xf32> to vector<32x128xf32>
    %97 = arith.addf %95, %96 : vector<32x128xf32>
    %cst_85 = arith.constant 0.000000e+00 : f32
    %98 = vector.broadcast %cst_85 : f32 to vector<32x128xf32>
    %99 = arith.maximumf %97, %98 : vector<32x128xf32>
    %c0_86 = arith.constant 0 : index
    %c0_87 = arith.constant 0 : index
    %100 = vector.load %arg8[%c0_86, %c0_87] : memref<32x128xf32, #tpu.memory_space<vmem>>, vector<32x128xf32>
    %101 = arith.maximumf %100, %99 : vector<32x128xf32>
    %c0_88 = arith.constant 0 : index
    %c0_89 = arith.constant 0 : index
    %102 = vector.load %arg8[%c0_88, %c0_89] : memref<32x128xf32, #tpu.memory_space<vmem>>, vector<32x128xf32>
    tpu.vector_store %arg8[%c0_88, %c0_89], %101 {strides = array<i32>} : memref<32x128xf32, #tpu.memory_space<vmem>>, vector<32x128xf32>,
    %c5 = arith.constant 5 : index
    %c0_90 = arith.constant 0 : index
    %c0_91 = arith.constant 0 : index
    %103 = vector.load %arg2[%c5, %c0_90, %c0_91] : memref<8x7x128xbf16, #tpu.memory_space<vmem>>, vector<1x7x128xbf16>
    %104 = vector.shape_cast %103 : vector<1x7x128xbf16> to vector<7x128xbf16>
    %c0_92 = arith.constant 0 : index
    %c0_93 = arith.constant 0 : index
    %105 = vector.load %arg3[%c0_92, %c0_93] : memref<16x7xbf16, #tpu.memory_space<vmem>>, vector<16x7xbf16>
    %c0_94 = arith.constant 0 : index
    %c0_95 = arith.constant 0 : index
    %106 = vector.load %arg4[%c0_94, %c0_95] : memref<16x1xf32, #tpu.memory_space<vmem>>, vector<16x1xf32>
    %cst_96 = arith.constant dense<0.000000e+00> : vector<16x128xf32>
    %107 = tpu.matmul %105, %104, %cst_96 {dimension_numbers = #tpu.dot_dimension_numbers<[1], [0], [0], [1], [0, 0, 1, 1], [], []>} : vector<16x7xbf16>, vector<7x128xbf16>, vector<16x128xf32> -> vector<16x128xf32>
    %108 = vector.broadcast %106 : vector<16x1xf32> to vector<16x128xf32>
    %109 = arith.addf %107, %108 : vector<16x128xf32>
    %cst_97 = arith.constant 0.000000e+00 : f32
    %110 = vector.broadcast %cst_97 : f32 to vector<16x128xf32>
    %111 = arith.maximumf %109, %110 : vector<16x128xf32>
    %112 = arith.truncf %111 : vector<16x128xf32> to vector<16x128xbf16>
    %c0_98 = arith.constant 0 : index
    %c0_99 = arith.constant 0 : index
    %113 = vector.load %arg5[%c0_98, %c0_99] : memref<32x16xbf16, #tpu.memory_space<vmem>>, vector<32x16xbf16>
    %c0_100 = arith.constant 0 : index
    %c0_101 = arith.constant 0 : index
    %114 = vector.load %arg6[%c0_100, %c0_101] : memref<32x1xf32, #tpu.memory_space<vmem>>, vector<32x1xf32>
    %cst_102 = arith.constant dense<0.000000e+00> : vector<32x128xf32>
    %115 = tpu.matmul %113, %112, %cst_102 {dimension_numbers = #tpu.dot_dimension_numbers<[1], [0], [0], [1], [0, 0, 1, 1], [], []>} : vector<32x16xbf16>, vector<16x128xbf16>, vector<32x128xf32> -> vector<32x128xf32>
    %116 = vector.broadcast %114 : vector<32x1xf32> to vector<32x128xf32>
    %117 = arith.addf %115, %116 : vector<32x128xf32>
    %cst_103 = arith.constant 0.000000e+00 : f32
    %118 = vector.broadcast %cst_103 : f32 to vector<32x128xf32>
    %119 = arith.maximumf %117, %118 : vector<32x128xf32>
    %c0_104 = arith.constant 0 : index
    %c0_105 = arith.constant 0 : index
    %120 = vector.load %arg8[%c0_104, %c0_105] : memref<32x128xf32, #tpu.memory_space<vmem>>, vector<32x128xf32>
    %121 = arith.maximumf %120, %119 : vector<32x128xf32>
    %c0_106 = arith.constant 0 : index
    %c0_107 = arith.constant 0 : index
    %122 = vector.load %arg8[%c0_106, %c0_107] : memref<32x128xf32, #tpu.memory_space<vmem>>, vector<32x128xf32>
    tpu.vector_store %arg8[%c0_106, %c0_107], %121 {strides = array<i32>} : memref<32x128xf32, #tpu.memory_space<vmem>>, vector<32x128xf32>,
    %c6 = arith.constant 6 : index
    %c0_108 = arith.constant 0 : index
    %c0_109 = arith.constant 0 : index
    %123 = vector.load %arg2[%c6, %c0_108, %c0_109] : memref<8x7x128xbf16, #tpu.memory_space<vmem>>, vector<1x7x128xbf16>
    %124 = vector.shape_cast %123 : vector<1x7x128xbf16> to vector<7x128xbf16>
    %c0_110 = arith.constant 0 : index
    %c0_111 = arith.constant 0 : index
    %125 = vector.load %arg3[%c0_110, %c0_111] : memref<16x7xbf16, #tpu.memory_space<vmem>>, vector<16x7xbf16>
    %c0_112 = arith.constant 0 : index
    %c0_113 = arith.constant 0 : index
    %126 = vector.load %arg4[%c0_112, %c0_113] : memref<16x1xf32, #tpu.memory_space<vmem>>, vector<16x1xf32>
    %cst_114 = arith.constant dense<0.000000e+00> : vector<16x128xf32>
    %127 = tpu.matmul %125, %124, %cst_114 {dimension_numbers = #tpu.dot_dimension_numbers<[1], [0], [0], [1], [0, 0, 1, 1], [], []>} : vector<16x7xbf16>, vector<7x128xbf16>, vector<16x128xf32> -> vector<16x128xf32>
    %128 = vector.broadcast %126 : vector<16x1xf32> to vector<16x128xf32>
    %129 = arith.addf %127, %128 : vector<16x128xf32>
    %cst_115 = arith.constant 0.000000e+00 : f32
    %130 = vector.broadcast %cst_115 : f32 to vector<16x128xf32>
    %131 = arith.maximumf %129, %130 : vector<16x128xf32>
    %132 = arith.truncf %131 : vector<16x128xf32> to vector<16x128xbf16>
    %c0_116 = arith.constant 0 : index
    %c0_117 = arith.constant 0 : index
    %133 = vector.load %arg5[%c0_116, %c0_117] : memref<32x16xbf16, #tpu.memory_space<vmem>>, vector<32x16xbf16>
    %c0_118 = arith.constant 0 : index
    %c0_119 = arith.constant 0 : index
    %134 = vector.load %arg6[%c0_118, %c0_119] : memref<32x1xf32, #tpu.memory_space<vmem>>, vector<32x1xf32>
    %cst_120 = arith.constant dense<0.000000e+00> : vector<32x128xf32>
    %135 = tpu.matmul %133, %132, %cst_120 {dimension_numbers = #tpu.dot_dimension_numbers<[1], [0], [0], [1], [0, 0, 1, 1], [], []>} : vector<32x16xbf16>, vector<16x128xbf16>, vector<32x128xf32> -> vector<32x128xf32>
    %136 = vector.broadcast %134 : vector<32x1xf32> to vector<32x128xf32>
    %137 = arith.addf %135, %136 : vector<32x128xf32>
    %cst_121 = arith.constant 0.000000e+00 : f32
    %138 = vector.broadcast %cst_121 : f32 to vector<32x128xf32>
    %139 = arith.maximumf %137, %138 : vector<32x128xf32>
    %c0_122 = arith.constant 0 : index
    %c0_123 = arith.constant 0 : index
    %140 = vector.load %arg8[%c0_122, %c0_123] : memref<32x128xf32, #tpu.memory_space<vmem>>, vector<32x128xf32>
    %141 = arith.maximumf %140, %139 : vector<32x128xf32>
    %c0_124 = arith.constant 0 : index
    %c0_125 = arith.constant 0 : index
    %142 = vector.load %arg8[%c0_124, %c0_125] : memref<32x128xf32, #tpu.memory_space<vmem>>, vector<32x128xf32>
    tpu.vector_store %arg8[%c0_124, %c0_125], %141 {strides = array<i32>} : memref<32x128xf32, #tpu.memory_space<vmem>>, vector<32x128xf32>,
    %c7 = arith.constant 7 : index
    %c0_126 = arith.constant 0 : index
    %c0_127 = arith.constant 0 : index
    %143 = vector.load %arg2[%c7, %c0_126, %c0_127] : memref<8x7x128xbf16, #tpu.memory_space<vmem>>, vector<1x7x128xbf16>
    %144 = vector.shape_cast %143 : vector<1x7x128xbf16> to vector<7x128xbf16>
    %c0_128 = arith.constant 0 : index
    %c0_129 = arith.constant 0 : index
    %145 = vector.load %arg3[%c0_128, %c0_129] : memref<16x7xbf16, #tpu.memory_space<vmem>>, vector<16x7xbf16>
    %c0_130 = arith.constant 0 : index
    %c0_131 = arith.constant 0 : index
    %146 = vector.load %arg4[%c0_130, %c0_131] : memref<16x1xf32, #tpu.memory_space<vmem>>, vector<16x1xf32>
    %cst_132 = arith.constant dense<0.000000e+00> : vector<16x128xf32>
    %147 = tpu.matmul %145, %144, %cst_132 {dimension_numbers = #tpu.dot_dimension_numbers<[1], [0], [0], [1], [0, 0, 1, 1], [], []>} : vector<16x7xbf16>, vector<7x128xbf16>, vector<16x128xf32> -> vector<16x128xf32>
    %148 = vector.broadcast %146 : vector<16x1xf32> to vector<16x128xf32>
    %149 = arith.addf %147, %148 : vector<16x128xf32>
    %cst_133 = arith.constant 0.000000e+00 : f32
    %150 = vector.broadcast %cst_133 : f32 to vector<16x128xf32>
    %151 = arith.maximumf %149, %150 : vector<16x128xf32>
    %152 = arith.truncf %151 : vector<16x128xf32> to vector<16x128xbf16>
    %c0_134 = arith.constant 0 : index
    %c0_135 = arith.constant 0 : index
    %153 = vector.load %arg5[%c0_134, %c0_135] : memref<32x16xbf16, #tpu.memory_space<vmem>>, vector<32x16xbf16>
    %c0_136 = arith.constant 0 : index
    %c0_137 = arith.constant 0 : index
    %154 = vector.load %arg6[%c0_136, %c0_137] : memref<32x1xf32, #tpu.memory_space<vmem>>, vector<32x1xf32>
    %cst_138 = arith.constant dense<0.000000e+00> : vector<32x128xf32>
    %155 = tpu.matmul %153, %152, %cst_138 {dimension_numbers = #tpu.dot_dimension_numbers<[1], [0], [0], [1], [0, 0, 1, 1], [], []>} : vector<32x16xbf16>, vector<16x128xbf16>, vector<32x128xf32> -> vector<32x128xf32>
    %156 = vector.broadcast %154 : vector<32x1xf32> to vector<32x128xf32>
    %157 = arith.addf %155, %156 : vector<32x128xf32>
    %cst_139 = arith.constant 0.000000e+00 : f32
    %158 = vector.broadcast %cst_139 : f32 to vector<32x128xf32>
    %159 = arith.maximumf %157, %158 : vector<32x128xf32>
    %c0_140 = arith.constant 0 : index
    %c0_141 = arith.constant 0 : index
    %160 = vector.load %arg8[%c0_140, %c0_141] : memref<32x128xf32, #tpu.memory_space<vmem>>, vector<32x128xf32>
    %161 = arith.maximumf %160, %159 : vector<32x128xf32>
    %c0_142 = arith.constant 0 : index
    %c0_143 = arith.constant 0 : index
    %162 = vector.load %arg8[%c0_142, %c0_143] : memref<32x128xf32, #tpu.memory_space<vmem>>, vector<32x128xf32>
    tpu.vector_store %arg8[%c0_142, %c0_143], %161 {strides = array<i32>} : memref<32x128xf32, #tpu.memory_space<vmem>>, vector<32x128xf32>,
    %c0_i32_144 = arith.constant 0 : i32
    %163 = arith.cmpi eq, %arg1, %c0_i32_144 : i32
    %164 = arith.extui %163 : i1 to i32
    %c0_i32_145 = arith.constant 0 : i32
    %165 = arith.cmpi ne, %164, %c0_i32_145 : i32
    scf.if %165 {
      %c0_146 = arith.constant 0 : index
      %c0_147 = arith.constant 0 : index
      %166 = vector.load %arg8[%c0_146, %c0_147] : memref<32x128xf32, #tpu.memory_space<vmem>>, vector<32x128xf32>
      %c0_148 = arith.constant 0 : index
      %c0_149 = arith.constant 0 : index
      %167 = vector.load %arg7[%c0_148, %c0_149] : memref<32x128xf32, #tpu.memory_space<vmem>>, vector<32x128xf32>
      tpu.vector_store %arg7[%c0_148, %c0_149], %166 {strides = array<i32>} : memref<32x128xf32, #tpu.memory_space<vmem>>, vector<32x128xf32>,
    } else {
    }
    return
  }
  func.func @transform_0(%arg0: i32, %arg1: i32) -> (i32, i32, i32) {
    %c0_i32 = arith.constant 0 : i32
    %c0_i32_0 = arith.constant 0 : i32
    return %arg1, %c0_i32, %arg0 : i32, i32, i32
  }
  func.func @transform_1(%arg0: i32, %arg1: i32) -> (i32, i32) {
    %c0_i32 = arith.constant 0 : i32
    %c0_i32_0 = arith.constant 0 : i32
    %c0_i32_1 = arith.constant 0 : i32
    return %c0_i32, %c0_i32_0 : i32, i32
  }
  func.func @transform_2(%arg0: i32, %arg1: i32) -> (i32, i32) {
    %c0_i32 = arith.constant 0 : i32
    %c0_i32_0 = arith.constant 0 : i32
    %c0_i32_1 = arith.constant 0 : i32
    return %c0_i32, %c0_i32_0 : i32, i32
  }
  func.func @transform_3(%arg0: i32, %arg1: i32) -> (i32, i32) {
    %c0_i32 = arith.constant 0 : i32
    %c0_i32_0 = arith.constant 0 : i32
    %c0_i32_1 = arith.constant 0 : i32
    return %c0_i32, %c0_i32_0 : i32, i32
  }
  func.func @transform_4(%arg0: i32, %arg1: i32) -> (i32, i32) {
    %c0_i32 = arith.constant 0 : i32
    %c0_i32_0 = arith.constant 0 : i32
    %c0_i32_1 = arith.constant 0 : i32
    return %c0_i32, %c0_i32_0 : i32, i32
  }
  func.func @transform_5(%arg0: i32, %arg1: i32) -> (i32, i32) {
    %c0_i32 = arith.constant 0 : i32
    %c0_i32_0 = arith.constant 0 : i32
    return %c0_i32, %arg0 : i32, i32
  }
}

</mosaic_0001>

<llo_original>
// kernel: tpu_custom_call.1
$region0: #{tpu_custom_call.1}
  #allocation0 [shape = 'u32[]', space=smem, size = 0x4, offset = 0x4, fixed_abs, tag = 'smem constant byte address 0x4 - core index']
  #allocation1 [shape = 'u32[72,128]{1,0:T(1,128)}', space=vmem, size = 0x9000, scoped, tag = 'internal scratch']
  #allocation2 [shape = 'f32[32,128]{1,0:T(8,128)}', space=vmem, size = 0x4000, scoped, tag = 'scratch operand']
  %s0 = inlined_call_operand.vmem [shape: bf16[8,7,128], index: 0, kind: input, shape index: {}]
  %s1 = inlined_call_operand.vmem [shape: bf16[16,7], index: 1, kind: input, shape index: {}]
  %s2 = inlined_call_operand.vmem [shape: f32[16,1], index: 2, kind: input, shape index: {}]
  %s3 = inlined_call_operand.vmem [shape: bf16[32,16], index: 3, kind: input, shape index: {}]
  %s4 = inlined_call_operand.vmem [shape: f32[32,1], index: 4, kind: input, shape index: {}]
  %s5 = inlined_call_operand.hbm [shape: f32[32,128], index: 5, kind: output, shape index: {}]
  %s6 = sld [smem:[#allocation0]]
  $region38: #{tpu_custom_call.1} parent=0
    _
  %s8 = ssub.s32 1, %s6
  %s9 = scalar_select 0, %s8, %s6
  $region1: #{tpu_custom_call.1} parent=0
    #allocation3 [shape = 'u8[16384]{0}', space=vmem, size = 0x4000, scoped, tag = 'output window, operand 0, single buffered']
    #allocation4 [shape = 's32[1]{0}', space=sflag, size = 0x4, scoped, tag = 'scoped memory for tpu_custom_call.1']
    %10 = vsyncpa [#allocation4], 0
    // Predicated region
    $region2: #{tpu_custom_call.1} parent=1 // pred_check
      _
    $region3: #{tpu_custom_call.1} parent=1 // pred_check_branch
      %12 = sbr.rel (0) target = $region5
    $region4: #{tpu_custom_call.1} parent=1 // pred_region
      _
    $region5: #{tpu_custom_call.1} parent=1 // pred_fallthru
      _
    // Predicated region
    $region6: #{tpu_custom_call.1} parent=1 // pred_check
      _
    $region7: #{tpu_custom_call.1} parent=1 // pred_check_branch
      %14 = sbr.rel (0) target = $region9
    $region8: #{tpu_custom_call.1} parent=1 // pred_region
      _
    $region9: #{tpu_custom_call.1} parent=1 // pred_fallthru
      _
    // Predicated region
    $region10: #{tpu_custom_call.1} parent=1 // pred_check
      _
    $region11: #{tpu_custom_call.1} parent=1 // pred_check_branch
      %16 = sbr.rel (0) target = $region13
    $region12: #{tpu_custom_call.1} parent=1 // pred_region
      _
    $region13: #{tpu_custom_call.1} parent=1 // pred_fallthru
      _
    // Predicated region
    $region14: #{tpu_custom_call.1} parent=1 // pred_check
      _
    $region15: #{tpu_custom_call.1} parent=1 // pred_check_branch
      %18 = sbr.rel (0) target = $region17
    $region16: #{tpu_custom_call.1} parent=1 // pred_region
      _
    $region17: #{tpu_custom_call.1} parent=1 // pred_fallthru
      _
    // Predicated region
    $region18: #{tpu_custom_call.1} parent=1 // pred_check
      _
    $region19: #{tpu_custom_call.1} parent=1 // pred_check_branch
      %20 = sbr.rel (0) target = $region21
    $region20: #{tpu_custom_call.1} parent=1 // pred_region
      _
    $region21: #{tpu_custom_call.1} parent=1 // pred_fallthru
      _
    %p22 = scmp.eq.s32.totalorder 0, 0
    // Predicated region
    $region22: #{tpu_custom_call.1} parent=1 // pred_check
      %p23 = pneg %p22
    $region23: #{tpu_custom_call.1} parent=1 // pred_check_branch
      %25 = sbr.rel (%p23) target = $region25
    $region24: #{tpu_custom_call.1} parent=1 // pred_region
      %26 = vst [vmem:[#allocation2] sm:$0xff] 0.0
      %27 = vst [vmem:[#allocation2 + $0x8] sm:$0xff] 0.0
      %28 = vst [vmem:[#allocation2 + $0x10] sm:$0xff] 0.0
      %29 = vst [vmem:[#allocation2 + $0x18] sm:$0xff] 0.0
    $region25: #{tpu_custom_call.1} parent=1 // pred_fallthru
      _
    %v30 = vld [vmem:[%s0] sm:$0xf]
    %v31 = vld [vmem:[%s1] sm:$0xf]
    %v32 = vld [vmem:[%s1 + $0x4] sm:$0xf]
    %v33 = vld [vmem:[%s2] sm:$0xff]
    %v34 = vld [vmem:[%s2 + $0x8] sm:$0xff]
    %36 = vset.pattern.permute.xlu0 0
    %37 = vperm.xlu0 %36, %v33
    %v38 = vpop.permute.xlu0 %37
    %41 = vset.pattern.permute.xlu0 0
    %42 = vperm.xlu0 %41, %v34
    %v43 = vpop.permute.xlu0 %42
    %v47 = vunpack.c.l.b16 %v31
    %v48 = vunpack.c.l.b16 %v32
    %v49 = vpack.c.b16 %v48, %v47
    %vm50 = vcmask 56320
    %v52 = vsel %vm50, %v49, 0
    %vm54 = vcmask 1042432
    %vm55 = vcmask 1043456
    %v56 = vsel %vm54, 4294967295, 65535
    %v57 = vsel %vm55, %v56, 0
    %v59 = vand.u32 %v30, %v57
    %61 = vmatpush.bf16.msra.mxu0 0
    %62 = vmatpush.bf16.msra.mxu0 0
    %63 = vmatpush.bf16.msra.mxu0 0
    %64 = vmatpush.bf16.msra.mxu0 0
    %65 = vmatpush.bf16.msra.mxu0 0
    %66 = vmatpush.bf16.msra.mxu0 0
    %67 = vmatpush.bf16.msra.mxu0 0
    %68 = vmatpush.bf16.msra.mxu0 %v59
    %69 = vmatmul.bf16.gmra.mxu0 %v52
    %v70 = vpop.f32.mrf.mxu0
    %v71 = vadd.f32 %v38, %v70
    %v72 = vpop.f32.mrf.mxu0
    %v73 = vadd.f32 %v43, %v72
    %74 = vdwg.mxu0
    %v75 = vmax.f32 %v71, 0.0
    %v76 = vmax.f32 %v73, 0.0
    %v77 = vpack.c.bf16 %v76, %v75
    %v78 = vld [vmem:[%s3] sm:$0xf]
    %v79 = vld [vmem:[%s3 + $0x4] sm:$0xf]
    %v80 = vld [vmem:[%s3 + $0x8] sm:$0xf]
    %v81 = vld [vmem:[%s3 + $0xc] sm:$0xf]
    %v82 = vld [vmem:[%s4] sm:$0xff]
    %v83 = vld [vmem:[%s4 + $0x8] sm:$0xff]
    %v84 = vld [vmem:[%s4 + $0x10] sm:$0xff]
    %v85 = vld [vmem:[%s4 + $0x18] sm:$0xff]
    %87 = vset.pattern.permute.xlu0 0
    %88 = vperm.xlu0 %87, %v82
    %v89 = vpop.permute.xlu0 %88
    %92 = vset.pattern.permute.xlu0 0
    %93 = vperm.xlu0 %92, %v83
    %v94 = vpop.permute.xlu0 %93
    %97 = vset.pattern.permute.xlu0 0
    %98 = vperm.xlu0 %97, %v84
    %v99 = vpop.permute.xlu0 %98
    %102 = vset.pattern.permute.xlu0 0
    %103 = vperm.xlu0 %102, %v85
    %v104 = vpop.permute.xlu0 %103
    %v110 = vunpack.c.l.b16 %v78
    %v111 = vunpack.c.l.b16 %v79
    %v112 = vunpack.c.l.b16 %v80
    %v113 = vunpack.c.l.b16 %v81
    %v114 = vpack.c.b16 %v111, %v110
    %v115 = vpack.c.b16 %v113, %v112
    %vm116 = vcmask 130048
    %v118 = vsel %vm116, %v114, 0
    %v121 = vsel %vm116, %v115, 0
    %123 = vmatpush.bf16.msra.mxu0 0
    %124 = vmatpush.bf16.msra.mxu0 0
    %125 = vmatpush.bf16.msra.mxu0 0
    %126 = vmatpush.bf16.msra.mxu0 0
    %127 = vmatpush.bf16.msra.mxu0 0
    %128 = vmatpush.bf16.msra.mxu0 0
    %129 = vmatpush.bf16.msra.mxu0 0
    %130 = vmatpush.bf16.msra.mxu0 %v77
    %131 = vmatmul.bf16.gmra.mxu0 %v118
    %v132 = vpop.f32.mrf.mxu0
    %v133 = vadd.f32 %v89, %v132
    %v134 = vpop.f32.mrf.mxu0
    %v135 = vadd.f32 %v94, %v134
    %136 = vmatmul.bf16.gmra.mxu0 %v121
    %v137 = vpop.f32.mrf.mxu0
    %v138 = vadd.f32 %v99, %v137
    %v139 = vpop.f32.mrf.mxu0
    %v140 = vadd.f32 %v104, %v139
    %141 = vdwg.mxu0
    %v142 = vmax.f32 %v133, 0.0
    %v143 = vmax.f32 %v135, 0.0
    %v144 = vmax.f32 %v138, 0.0
    %v145 = vmax.f32 %v140, 0.0
    %v146 = vld [vmem:[#allocation2] sm:$0xff]
    %v147 = vld [vmem:[#allocation2 + $0x8] sm:$0xff]
    %v148 = vld [vmem:[#allocation2 + $0x10] sm:$0xff]
    %v149 = vld [vmem:[#allocation2 + $0x18] sm:$0xff]
    %v150 = vmax.f32 %v146, %v142
    %v151 = vmax.f32 %v147, %v143
    %v152 = vmax.f32 %v148, %v144
    %v153 = vmax.f32 %v149, %v145
    %154 = vst [vmem:[#allocation2] sm:$0xff] %v150
    %155 = vst [vmem:[#allocation2 + $0x8] sm:$0xff] %v151
    %156 = vst [vmem:[#allocation2 + $0x10] sm:$0xff] %v152
    %157 = vst [vmem:[#allocation2 + $0x18] sm:$0xff] %v153
    %s158 = scalar_lea.vmem %s0, 4
    %v159 = vld [vmem:[%s158] sm:$0xf]
    %v160 = vld [vmem:[%s1] sm:$0xf]
    %v161 = vld [vmem:[%s1 + $0x4] sm:$0xf]
    %v162 = vld [vmem:[%s2] sm:$0xff]
    %v163 = vld [vmem:[%s2 + $0x8] sm:$0xff]
    %165 = vset.pattern.permute.xlu0 0
    %166 = vperm.xlu0 %165, %v162
    %v167 = vpop.permute.xlu0 %166
    %170 = vset.pattern.permute.xlu0 0
    %171 = vperm.xlu0 %170, %v163
    %v172 = vpop.permute.xlu0 %171
    %v176 = vunpack.c.l.b16 %v160
    %v177 = vunpack.c.l.b16 %v161
    %v178 = vpack.c.b16 %v177, %v176
    %v180 = vsel %vm50, %v178, 0
    %v183 = vand.u32 %v159, %v57
    %185 = vmatpush.bf16.msra.mxu0 0
    %186 = vmatpush.bf16.msra.mxu0 0
    %187 = vmatpush.bf16.msra.mxu0 0
    %188 = vmatpush.bf16.msra.mxu0 0
    %189 = vmatpush.bf16.msra.mxu0 0
    %190 = vmatpush.bf16.msra.mxu0 0
    %191 = vmatpush.bf16.msra.mxu0 0
    %192 = vmatpush.bf16.msra.mxu0 %v183
    %193 = vmatmul.bf16.gmra.mxu0 %v180
    %v194 = vpop.f32.mrf.mxu0
    %v195 = vadd.f32 %v167, %v194
    %v196 = vpop.f32.mrf.mxu0
    %v197 = vadd.f32 %v172, %v196
    %198 = vdwg.mxu0
    %v199 = vmax.f32 %v195, 0.0
    %v200 = vmax.f32 %v197, 0.0
    %v201 = vpack.c.bf16 %v200, %v199
    %v202 = vld [vmem:[%s3] sm:$0xf]
    %v203 = vld [vmem:[%s3 + $0x4] sm:$0xf]
    %v204 = vld [vmem:[%s3 + $0x8] sm:$0xf]
    %v205 = vld [vmem:[%s3 + $0xc] sm:$0xf]
    %v206 = vld [vmem:[%s4] sm:$0xff]
    %v207 = vld [vmem:[%s4 + $0x8] sm:$0xff]
    %v208 = vld [vmem:[%s4 + $0x10] sm:$0xff]
    %v209 = vld [vmem:[%s4 + $0x18] sm:$0xff]
    %211 = vset.pattern.permute.xlu0 0
    %212 = vperm.xlu0 %211, %v206
    %v213 = vpop.permute.xlu0 %212
    %216 = vset.pattern.permute.xlu0 0
    %217 = vperm.xlu0 %216, %v207
    %v218 = vpop.permute.xlu0 %217
    %221 = vset.pattern.permute.xlu0 0
    %222 = vperm.xlu0 %221, %v208
    %v223 = vpop.permute.xlu0 %222
    %226 = vset.pattern.permute.xlu0 0
    %227 = vperm.xlu0 %226, %v209
    %v228 = vpop.permute.xlu0 %227
    %v234 = vunpack.c.l.b16 %v202
    %v235 = vunpack.c.l.b16 %v203
    %v236 = vunpack.c.l.b16 %v204
    %v237 = vunpack.c.l.b16 %v205
    %v238 = vpack.c.b16 %v235, %v234
    %v239 = vpack.c.b16 %v237, %v236
    %v241 = vsel %vm116, %v238, 0
    %v244 = vsel %vm116, %v239, 0
    %246 = vmatpush.bf16.msra.mxu0 0
    %247 = vmatpush.bf16.msra.mxu0 0
    %248 = vmatpush.bf16.msra.mxu0 0
    %249 = vmatpush.bf16.msra.mxu0 0
    %250 = vmatpush.bf16.msra.mxu0 0
    %251 = vmatpush.bf16.msra.mxu0 0
    %252 = vmatpush.bf16.msra.mxu0 0
    %253 = vmatpush.bf16.msra.mxu0 %v201
    %254 = vmatmul.bf16.gmra.mxu0 %v241
    %v255 = vpop.f32.mrf.mxu0
    %v256 = vadd.f32 %v213, %v255
    %v257 = vpop.f32.mrf.mxu0
    %v258 = vadd.f32 %v218, %v257
    %259 = vmatmul.bf16.gmra.mxu0 %v244
    %v260 = vpop.f32.mrf.mxu0
    %v261 = vadd.f32 %v223, %v260
    %v262 = vpop.f32.mrf.mxu0
    %v263 = vadd.f32 %v228, %v262
    %264 = vdwg.mxu0
    %v265 = vmax.f32 %v256, 0.0
    %v266 = vmax.f32 %v258, 0.0
    %v267 = vmax.f32 %v261, 0.0
    %v268 = vmax.f32 %v263, 0.0
    %v269 = vld [vmem:[#allocation2] sm:$0xff]
    %v270 = vld [vmem:[#allocation2 + $0x8] sm:$0xff]
    %v271 = vld [vmem:[#allocation2 + $0x10] sm:$0xff]
    %v272 = vld [vmem:[#allocation2 + $0x18] sm:$0xff]
    %v273 = vmax.f32 %v269, %v265
    %v274 = vmax.f32 %v270, %v266
    %v275 = vmax.f32 %v271, %v267
    %v276 = vmax.f32 %v272, %v268
    %277 = vst [vmem:[#allocation2] sm:$0xff] %v273
    %278 = vst [vmem:[#allocation2 + $0x8] sm:$0xff] %v274
    %279 = vst [vmem:[#allocation2 + $0x10] sm:$0xff] %v275
    %280 = vst [vmem:[#allocation2 + $0x18] sm:$0xff] %v276
    %s281 = scalar_lea.vmem %s0, 8
    %v282 = vld [vmem:[%s281] sm:$0xf]
    %v283 = vld [vmem:[%s1] sm:$0xf]
    %v284 = vld [vmem:[%s1 + $0x4] sm:$0xf]
    %v285 = vld [vmem:[%s2] sm:$0xff]
    %v286 = vld [vmem:[%s2 + $0x8] sm:$0xff]
    %288 = vset.pattern.permute.xlu0 0
    %289 = vperm.xlu0 %288, %v285
    %v290 = vpop.permute.xlu0 %289
    %293 = vset.pattern.permute.xlu0 0
    %294 = vperm.xlu0 %293, %v286
    %v295 = vpop.permute.xlu0 %294
    %v299 = vunpack.c.l.b16 %v283
    %v300 = vunpack.c.l.b16 %v284
    %v301 = vpack.c.b16 %v300, %v299
    %v303 = vsel %vm50, %v301, 0
    %v306 = vand.u32 %v282, %v57
    %308 = vmatpush.bf16.msra.mxu0 0
    %309 = vmatpush.bf16.msra.mxu0 0
    %310 = vmatpush.bf16.msra.mxu0 0
    %311 = vmatpush.bf16.msra.mxu0 0
    %312 = vmatpush.bf16.msra.mxu0 0
    %313 = vmatpush.bf16.msra.mxu0 0
    %314 = vmatpush.bf16.msra.mxu0 0
    %315 = vmatpush.bf16.msra.mxu0 %v306
    %316 = vmatmul.bf16.gmra.mxu0 %v303
    %v317 = vpop.f32.mrf.mxu0
    %v318 = vadd.f32 %v290, %v317
    %v319 = vpop.f32.mrf.mxu0
    %v320 = vadd.f32 %v295, %v319
    %321 = vdwg.mxu0
    %v322 = vmax.f32 %v318, 0.0
    %v323 = vmax.f32 %v320, 0.0
    %v324 = vpack.c.bf16 %v323, %v322
    %v325 = vld [vmem:[%s3] sm:$0xf]
    %v326 = vld [vmem:[%s3 + $0x4] sm:$0xf]
    %v327 = vld [vmem:[%s3 + $0x8] sm:$0xf]
    %v328 = vld [vmem:[%s3 + $0xc] sm:$0xf]
    %v329 = vld [vmem:[%s4] sm:$0xff]
    %v330 = vld [vmem:[%s4 + $0x8] sm:$0xff]
    %v331 = vld [vmem:[%s4 + $0x10] sm:$0xff]
    %v332 = vld [vmem:[%s4 + $0x18] sm:$0xff]
    %334 = vset.pattern.permute.xlu0 0
    %335 = vperm.xlu0 %334, %v329
    %v336 = vpop.permute.xlu0 %335
    %339 = vset.pattern.permute.xlu0 0
    %340 = vperm.xlu0 %339, %v330
    %v341 = vpop.permute.xlu0 %340
    %344 = vset.pattern.permute.xlu0 0
    %345 = vperm.xlu0 %344, %v331
    %v346 = vpop.permute.xlu0 %345
    %349 = vset.pattern.permute.xlu0 0
    %350 = vperm.xlu0 %349, %v332
    %v351 = vpop.permute.xlu0 %350
    %v357 = vunpack.c.l.b16 %v325
    %v358 = vunpack.c.l.b16 %v326
    %v359 = vunpack.c.l.b16 %v327
    %v360 = vunpack.c.l.b16 %v328
    %v361 = vpack.c.b16 %v358, %v357
    %v362 = vpack.c.b16 %v360, %v359
    %v364 = vsel %vm116, %v361, 0
    %v367 = vsel %vm116, %v362, 0
    %369 = vmatpush.bf16.msra.mxu0 0
    %370 = vmatpush.bf16.msra.mxu0 0
    %371 = vmatpush.bf16.msra.mxu0 0
    %372 = vmatpush.bf16.msra.mxu0 0
    %373 = vmatpush.bf16.msra.mxu0 0
    %374 = vmatpush.bf16.msra.mxu0 0
    %375 = vmatpush.bf16.msra.mxu0 0
    %376 = vmatpush.bf16.msra.mxu0 %v324
    %377 = vmatmul.bf16.gmra.mxu0 %v364
    %v378 = vpop.f32.mrf.mxu0
    %v379 = vadd.f32 %v336, %v378
    %v380 = vpop.f32.mrf.mxu0
    %v381 = vadd.f32 %v341, %v380
    %382 = vmatmul.bf16.gmra.mxu0 %v367
    %v383 = vpop.f32.mrf.mxu0
    %v384 = vadd.f32 %v346, %v383
    %v385 = vpop.f32.mrf.mxu0
    %v386 = vadd.f32 %v351, %v385
    %387 = vdwg.mxu0
    %v388 = vmax.f32 %v379, 0.0
    %v389 = vmax.f32 %v381, 0.0
    %v390 = vmax.f32 %v384, 0.0
    %v391 = vmax.f32 %v386, 0.0
    %v392 = vld [vmem:[#allocation2] sm:$0xff]
    %v393 = vld [vmem:[#allocation2 + $0x8] sm:$0xff]
    %v394 = vld [vmem:[#allocation2 + $0x10] sm:$0xff]
    %v395 = vld [vmem:[#allocation2 + $0x18] sm:$0xff]
    %v396 = vmax.f32 %v392, %v388
    %v397 = vmax.f32 %v393, %v389
    %v398 = vmax.f32 %v394, %v390
    %v399 = vmax.f32 %v395, %v391
    %400 = vst [vmem:[#allocation2] sm:$0xff] %v396
    %401 = vst [vmem:[#allocation2 + $0x8] sm:$0xff] %v397
    %402 = vst [vmem:[#allocation2 + $0x10] sm:$0xff] %v398
    %403 = vst [vmem:[#allocation2 + $0x18] sm:$0xff] %v399
    %s404 = scalar_lea.vmem %s0, 12
    %v405 = vld [vmem:[%s404] sm:$0xf]
    %v406 = vld [vmem:[%s1] sm:$0xf]
    %v407 = vld [vmem:[%s1 + $0x4] sm:$0xf]
    %v408 = vld [vmem:[%s2] sm:$0xff]
    %v409 = vld [vmem:[%s2 + $0x8] sm:$0xff]
    %411 = vset.pattern.permute.xlu0 0
    %412 = vperm.xlu0 %411, %v408
    %v413 = vpop.permute.xlu0 %412
    %416 = vset.pattern.permute.xlu0 0
    %417 = vperm.xlu0 %416, %v409
    %v418 = vpop.permute.xlu0 %417
    %v422 = vunpack.c.l.b16 %v406
    %v423 = vunpack.c.l.b16 %v407
    %v424 = vpack.c.b16 %v423, %v422
    %v426 = vsel %vm50, %v424, 0
    %v429 = vand.u32 %v405, %v57
    %431 = vmatpush.bf16.msra.mxu0 0
    %432 = vmatpush.bf16.msra.mxu0 0
    %433 = vmatpush.bf16.msra.mxu0 0
    %434 = vmatpush.bf16.msra.mxu0 0
    %435 = vmatpush.bf16.msra.mxu0 0
    %436 = vmatpush.bf16.msra.mxu0 0
    %437 = vmatpush.bf16.msra.mxu0 0
    %438 = vmatpush.bf16.msra.mxu0 %v429
    %439 = vmatmul.bf16.gmra.mxu0 %v426
    %v440 = vpop.f32.mrf.mxu0
    %v441 = vadd.f32 %v413, %v440
    %v442 = vpop.f32.mrf.mxu0
    %v443 = vadd.f32 %v418, %v442
    %444 = vdwg.mxu0
    %v445 = vmax.f32 %v441, 0.0
    %v446 = vmax.f32 %v443, 0.0
    %v447 = vpack.c.bf16 %v446, %v445
    %v448 = vld [vmem:[%s3] sm:$0xf]
    %v449 = vld [vmem:[%s3 + $0x4] sm:$0xf]
    %v450 = vld [vmem:[%s3 + $0x8] sm:$0xf]
    %v451 = vld [vmem:[%s3 + $0xc] sm:$0xf]
    %v452 = vld [vmem:[%s4] sm:$0xff]
    %v453 = vld [vmem:[%s4 + $0x8] sm:$0xff]
    %v454 = vld [vmem:[%s4 + $0x10] sm:$0xff]
    %v455 = vld [vmem:[%s4 + $0x18] sm:$0xff]
    %457 = vset.pattern.permute.xlu0 0
    %458 = vperm.xlu0 %457, %v452
    %v459 = vpop.permute.xlu0 %458
    %462 = vset.pattern.permute.xlu0 0
    %463 = vperm.xlu0 %462, %v453
    %v464 = vpop.permute.xlu0 %463
    %467 = vset.pattern.permute.xlu0 0
    %468 = vperm.xlu0 %467, %v454
    %v469 = vpop.permute.xlu0 %468
    %472 = vset.pattern.permute.xlu0 0
    %473 = vperm.xlu0 %472, %v455
    %v474 = vpop.permute.xlu0 %473
    %v480 = vunpack.c.l.b16 %v448
    %v481 = vunpack.c.l.b16 %v449
    %v482 = vunpack.c.l.b16 %v450
    %v483 = vunpack.c.l.b16 %v451
    %v484 = vpack.c.b16 %v481, %v480
    %v485 = vpack.c.b16 %v483, %v482
    %v487 = vsel %vm116, %v484, 0
    %v490 = vsel %vm116, %v485, 0
    %492 = vmatpush.bf16.msra.mxu0 0
    %493 = vmatpush.bf16.msra.mxu0 0
    %494 = vmatpush.bf16.msra.mxu0 0
    %495 = vmatpush.bf16.msra.mxu0 0
    %496 = vmatpush.bf16.msra.mxu0 0
    %497 = vmatpush.bf16.msra.mxu0 0
    %498 = vmatpush.bf16.msra.mxu0 0
    %499 = vmatpush.bf16.msra.mxu0 %v447
    %500 = vmatmul.bf16.gmra.mxu0 %v487
    %v501 = vpop.f32.mrf.mxu0
    %v502 = vadd.f32 %v459, %v501
    %v503 = vpop.f32.mrf.mxu0
    %v504 = vadd.f32 %v464, %v503
    %505 = vmatmul.bf16.gmra.mxu0 %v490
    %v506 = vpop.f32.mrf.mxu0
    %v507 = vadd.f32 %v469, %v506
    %v508 = vpop.f32.mrf.mxu0
    %v509 = vadd.f32 %v474, %v508
    %510 = vdwg.mxu0
    %v511 = vmax.f32 %v502, 0.0
    %v512 = vmax.f32 %v504, 0.0
    %v513 = vmax.f32 %v507, 0.0
    %v514 = vmax.f32 %v509, 0.0
    %v515 = vld [vmem:[#allocation2] sm:$0xff]
    %v516 = vld [vmem:[#allocation2 + $0x8] sm:$0xff]
    %v517 = vld [vmem:[#allocation2 + $0x10] sm:$0xff]
    %v518 = vld [vmem:[#allocation2 + $0x18] sm:$0xff]
    %v519 = vmax.f32 %v515, %v511
    %v520 = vmax.f32 %v516, %v512
    %v521 = vmax.f32 %v517, %v513
    %v522 = vmax.f32 %v518, %v514
    %523 = vst [vmem:[#allocation2] sm:$0xff] %v519
    %524 = vst [vmem:[#allocation2 + $0x8] sm:$0xff] %v520
    %525 = vst [vmem:[#allocation2 + $0x10] sm:$0xff] %v521
    %526 = vst [vmem:[#allocation2 + $0x18] sm:$0xff] %v522
    %s527 = scalar_lea.vmem %s0, 16
    %v528 = vld [vmem:[%s527] sm:$0xf]
    %v529 = vld [vmem:[%s1] sm:$0xf]
    %v530 = vld [vmem:[%s1 + $0x4] sm:$0xf]
    %v531 = vld [vmem:[%s2] sm:$0xff]
    %v532 = vld [vmem:[%s2 + $0x8] sm:$0xff]
    %534 = vset.pattern.permute.xlu0 0
    %535 = vperm.xlu0 %534, %v531
    %v536 = vpop.permute.xlu0 %535
    %539 = vset.pattern.permute.xlu0 0
    %540 = vperm.xlu0 %539, %v532
    %v541 = vpop.permute.xlu0 %540
    %v545 = vunpack.c.l.b16 %v529
    %v546 = vunpack.c.l.b16 %v530
    %v547 = vpack.c.b16 %v546, %v545
    %v549 = vsel %vm50, %v547, 0
    %v552 = vand.u32 %v528, %v57
    %554 = vmatpush.bf16.msra.mxu0 0
    %555 = vmatpush.bf16.msra.mxu0 0
    %556 = vmatpush.bf16.msra.mxu0 0
    %557 = vmatpush.bf16.msra.mxu0 0
    %558 = vmatpush.bf16.msra.mxu0 0
    %559 = vmatpush.bf16.msra.mxu0 0
    %560 = vmatpush.bf16.msra.mxu0 0
    %561 = vmatpush.bf16.msra.mxu0 %v552
    %562 = vmatmul.bf16.gmra.mxu0 %v549
    %v563 = vpop.f32.mrf.mxu0
    %v564 = vadd.f32 %v536, %v563
    %v565 = vpop.f32.mrf.mxu0
    %v566 = vadd.f32 %v541, %v565
    %567 = vdwg.mxu0
    %v568 = vmax.f32 %v564, 0.0
    %v569 = vmax.f32 %v566, 0.0
    %v570 = vpack.c.bf16 %v569, %v568
    %v571 = vld [vmem:[%s3] sm:$0xf]
    %v572 = vld [vmem:[%s3 + $0x4] sm:$0xf]
    %v573 = vld [vmem:[%s3 + $0x8] sm:$0xf]
    %v574 = vld [vmem:[%s3 + $0xc] sm:$0xf]
    %v575 = vld [vmem:[%s4] sm:$0xff]
    %v576 = vld [vmem:[%s4 + $0x8] sm:$0xff]
    %v577 = vld [vmem:[%s4 + $0x10] sm:$0xff]
    %v578 = vld [vmem:[%s4 + $0x18] sm:$0xff]
    %580 = vset.pattern.permute.xlu0 0
    %581 = vperm.xlu0 %580, %v575
    %v582 = vpop.permute.xlu0 %581
    %585 = vset.pattern.permute.xlu0 0
    %586 = vperm.xlu0 %585, %v576
    %v587 = vpop.permute.xlu0 %586
    %590 = vset.pattern.permute.xlu0 0
    %591 = vperm.xlu0 %590, %v577
    %v592 = vpop.permute.xlu0 %591
    %595 = vset.pattern.permute.xlu0 0
    %596 = vperm.xlu0 %595, %v578
    %v597 = vpop.permute.xlu0 %596
    %v603 = vunpack.c.l.b16 %v571
    %v604 = vunpack.c.l.b16 %v572
    %v605 = vunpack.c.l.b16 %v573
    %v606 = vunpack.c.l.b16 %v574
    %v607 = vpack.c.b16 %v604, %v603
    %v608 = vpack.c.b16 %v606, %v605
    %v610 = vsel %vm116, %v607, 0
    %v613 = vsel %vm116, %v608, 0
    %615 = vmatpush.bf16.msra.mxu0 0
    %616 = vmatpush.bf16.msra.mxu0 0
    %617 = vmatpush.bf16.msra.mxu0 0
    %618 = vmatpush.bf16.msra.mxu0 0
    %619 = vmatpush.bf16.msra.mxu0 0
    %620 = vmatpush.bf16.msra.mxu0 0
    %621 = vmatpush.bf16.msra.mxu0 0
    %622 = vmatpush.bf16.msra.mxu0 %v570
    %623 = vmatmul.bf16.gmra.mxu0 %v610
    %v624 = vpop.f32.mrf.mxu0
    %v625 = vadd.f32 %v582, %v624
    %v626 = vpop.f32.mrf.mxu0
    %v627 = vadd.f32 %v587, %v626
    %628 = vmatmul.bf16.gmra.mxu0 %v613
    %v629 = vpop.f32.mrf.mxu0
    %v630 = vadd.f32 %v592, %v629
    %v631 = vpop.f32.mrf.mxu0
    %v632 = vadd.f32 %v597, %v631
    %633 = vdwg.mxu0
    %v634 = vmax.f32 %v625, 0.0
    %v635 = vmax.f32 %v627, 0.0
    %v636 = vmax.f32 %v630, 0.0
    %v637 = vmax.f32 %v632, 0.0
    %v638 = vld [vmem:[#allocation2] sm:$0xff]
    %v639 = vld [vmem:[#allocation2 + $0x8] sm:$0xff]
    %v640 = vld [vmem:[#allocation2 + $0x10] sm:$0xff]
    %v641 = vld [vmem:[#allocation2 + $0x18] sm:$0xff]
    %v642 = vmax.f32 %v638, %v634
    %v643 = vmax.f32 %v639, %v635
    %v644 = vmax.f32 %v640, %v636
    %v645 = vmax.f32 %v641, %v637
    %646 = vst [vmem:[#allocation2] sm:$0xff] %v642
    %647 = vst [vmem:[#allocation2 + $0x8] sm:$0xff] %v643
    %648 = vst [vmem:[#allocation2 + $0x10] sm:$0xff] %v644
    %649 = vst [vmem:[#allocation2 + $0x18] sm:$0xff] %v645
    %s650 = scalar_lea.vmem %s0, 20
    %v651 = vld [vmem:[%s650] sm:$0xf]
    %v652 = vld [vmem:[%s1] sm:$0xf]
    %v653 = vld [vmem:[%s1 + $0x4] sm:$0xf]
    %v654 = vld [vmem:[%s2] sm:$0xff]
    %v655 = vld [vmem:[%s2 + $0x8] sm:$0xff]
    %657 = vset.pattern.permute.xlu0 0
    %658 = vperm.xlu0 %657, %v654
    %v659 = vpop.permute.xlu0 %658
    %662 = vset.pattern.permute.xlu0 0
    %663 = vperm.xlu0 %662, %v655
    %v664 = vpop.permute.xlu0 %663
    %v668 = vunpack.c.l.b16 %v652
    %v669 = vunpack.c.l.b16 %v653
    %v670 = vpack.c.b16 %v669, %v668
    %v672 = vsel %vm50, %v670, 0
    %v675 = vand.u32 %v651, %v57
    %677 = vmatpush.bf16.msra.mxu0 0
    %678 = vmatpush.bf16.msra.mxu0 0
    %679 = vmatpush.bf16.msra.mxu0 0
    %680 = vmatpush.bf16.msra.mxu0 0
    %681 = vmatpush.bf16.msra.mxu0 0
    %682 = vmatpush.bf16.msra.mxu0 0
    %683 = vmatpush.bf16.msra.mxu0 0
    %684 = vmatpush.bf16.msra.mxu0 %v675
    %685 = vmatmul.bf16.gmra.mxu0 %v672
    %v686 = vpop.f32.mrf.mxu0
    %v687 = vadd.f32 %v659, %v686
    %v688 = vpop.f32.mrf.mxu0
    %v689 = vadd.f32 %v664, %v688
    %690 = vdwg.mxu0
    %v691 = vmax.f32 %v687, 0.0
    %v692 = vmax.f32 %v689, 0.0
    %v693 = vpack.c.bf16 %v692, %v691
    %v694 = vld [vmem:[%s3] sm:$0xf]
    %v695 = vld [vmem:[%s3 + $0x4] sm:$0xf]
    %v696 = vld [vmem:[%s3 + $0x8] sm:$0xf]
    %v697 = vld [vmem:[%s3 + $0xc] sm:$0xf]
    %v698 = vld [vmem:[%s4] sm:$0xff]
    %v699 = vld [vmem:[%s4 + $0x8] sm:$0xff]
    %v700 = vld [vmem:[%s4 + $0x10] sm:$0xff]
    %v701 = vld [vmem:[%s4 + $0x18] sm:$0xff]
    %703 = vset.pattern.permute.xlu0 0
    %704 = vperm.xlu0 %703, %v698
    %v705 = vpop.permute.xlu0 %704
    %708 = vset.pattern.permute.xlu0 0
    %709 = vperm.xlu0 %708, %v699
    %v710 = vpop.permute.xlu0 %709
    %713 = vset.pattern.permute.xlu0 0
    %714 = vperm.xlu0 %713, %v700
    %v715 = vpop.permute.xlu0 %714
    %718 = vset.pattern.permute.xlu0 0
    %719 = vperm.xlu0 %718, %v701
    %v720 = vpop.permute.xlu0 %719
    %v726 = vunpack.c.l.b16 %v694
    %v727 = vunpack.c.l.b16 %v695
    %v728 = vunpack.c.l.b16 %v696
    %v729 = vunpack.c.l.b16 %v697
    %v730 = vpack.c.b16 %v727, %v726
    %v731 = vpack.c.b16 %v729, %v728
    %v733 = vsel %vm116, %v730, 0
    %v736 = vsel %vm116, %v731, 0
    %738 = vmatpush.bf16.msra.mxu0 0
    %739 = vmatpush.bf16.msra.mxu0 0
    %740 = vmatpush.bf16.msra.mxu0 0
    %741 = vmatpush.bf16.msra.mxu0 0
    %742 = vmatpush.bf16.msra.mxu0 0
    %743 = vmatpush.bf16.msra.mxu0 0
    %744 = vmatpush.bf16.msra.mxu0 0
    %745 = vmatpush.bf16.msra.mxu0 %v693
    %746 = vmatmul.bf16.gmra.mxu0 %v733
    %v747 = vpop.f32.mrf.mxu0
    %v748 = vadd.f32 %v705, %v747
    %v749 = vpop.f32.mrf.mxu0
    %v750 = vadd.f32 %v710, %v749
    %751 = vmatmul.bf16.gmra.mxu0 %v736
    %v752 = vpop.f32.mrf.mxu0
    %v753 = vadd.f32 %v715, %v752
    %v754 = vpop.f32.mrf.mxu0
    %v755 = vadd.f32 %v720, %v754
    %756 = vdwg.mxu0
    %v757 = vmax.f32 %v748, 0.0
    %v758 = vmax.f32 %v750, 0.0
    %v759 = vmax.f32 %v753, 0.0
    %v760 = vmax.f32 %v755, 0.0
    %v761 = vld [vmem:[#allocation2] sm:$0xff]
    %v762 = vld [vmem:[#allocation2 + $0x8] sm:$0xff]
    %v763 = vld [vmem:[#allocation2 + $0x10] sm:$0xff]
    %v764 = vld [vmem:[#allocation2 + $0x18] sm:$0xff]
    %v765 = vmax.f32 %v761, %v757
    %v766 = vmax.f32 %v762, %v758
    %v767 = vmax.f32 %v763, %v759
    %v768 = vmax.f32 %v764, %v760
    %769 = vst [vmem:[#allocation2] sm:$0xff] %v765
    %770 = vst [vmem:[#allocation2 + $0x8] sm:$0xff] %v766
    %771 = vst [vmem:[#allocation2 + $0x10] sm:$0xff] %v767
    %772 = vst [vmem:[#allocation2 + $0x18] sm:$0xff] %v768
    %s773 = scalar_lea.vmem %s0, 24
    %v774 = vld [vmem:[%s773] sm:$0xf]
    %v775 = vld [vmem:[%s1] sm:$0xf]
    %v776 = vld [vmem:[%s1 + $0x4] sm:$0xf]
    %v777 = vld [vmem:[%s2] sm:$0xff]
    %v778 = vld [vmem:[%s2 + $0x8] sm:$0xff]
    %780 = vset.pattern.permute.xlu0 0
    %781 = vperm.xlu0 %780, %v777
    %v782 = vpop.permute.xlu0 %781
    %785 = vset.pattern.permute.xlu0 0
    %786 = vperm.xlu0 %785, %v778
    %v787 = vpop.permute.xlu0 %786
    %v791 = vunpack.c.l.b16 %v775
    %v792 = vunpack.c.l.b16 %v776
    %v793 = vpack.c.b16 %v792, %v791
    %v795 = vsel %vm50, %v793, 0
    %v798 = vand.u32 %v774, %v57
    %800 = vmatpush.bf16.msra.mxu0 0
    %801 = vmatpush.bf16.msra.mxu0 0
    %802 = vmatpush.bf16.msra.mxu0 0
    %803 = vmatpush.bf16.msra.mxu0 0
    %804 = vmatpush.bf16.msra.mxu0 0
    %805 = vmatpush.bf16.msra.mxu0 0
    %806 = vmatpush.bf16.msra.mxu0 0
    %807 = vmatpush.bf16.msra.mxu0 %v798
    %808 = vmatmul.bf16.gmra.mxu0 %v795
    %v809 = vpop.f32.mrf.mxu0
    %v810 = vadd.f32 %v782, %v809
    %v811 = vpop.f32.mrf.mxu0
    %v812 = vadd.f32 %v787, %v811
    %813 = vdwg.mxu0
    %v814 = vmax.f32 %v810, 0.0
    %v815 = vmax.f32 %v812, 0.0
    %v816 = vpack.c.bf16 %v815, %v814
    %v817 = vld [vmem:[%s3] sm:$0xf]
    %v818 = vld [vmem:[%s3 + $0x4] sm:$0xf]
    %v819 = vld [vmem:[%s3 + $0x8] sm:$0xf]
    %v820 = vld [vmem:[%s3 + $0xc] sm:$0xf]
    %v821 = vld [vmem:[%s4] sm:$0xff]
    %v822 = vld [vmem:[%s4 + $0x8] sm:$0xff]
    %v823 = vld [vmem:[%s4 + $0x10] sm:$0xff]
    %v824 = vld [vmem:[%s4 + $0x18] sm:$0xff]
    %826 = vset.pattern.permute.xlu0 0
    %827 = vperm.xlu0 %826, %v821
    %v828 = vpop.permute.xlu0 %827
    %831 = vset.pattern.permute.xlu0 0
    %832 = vperm.xlu0 %831, %v822
    %v833 = vpop.permute.xlu0 %832
    %836 = vset.pattern.permute.xlu0 0
    %837 = vperm.xlu0 %836, %v823
    %v838 = vpop.permute.xlu0 %837
    %841 = vset.pattern.permute.xlu0 0
    %842 = vperm.xlu0 %841, %v824
    %v843 = vpop.permute.xlu0 %842
    %v849 = vunpack.c.l.b16 %v817
    %v850 = vunpack.c.l.b16 %v818
    %v851 = vunpack.c.l.b16 %v819
    %v852 = vunpack.c.l.b16 %v820
    %v853 = vpack.c.b16 %v850, %v849
    %v854 = vpack.c.b16 %v852, %v851
    %v856 = vsel %vm116, %v853, 0
    %v859 = vsel %vm116, %v854, 0
    %861 = vmatpush.bf16.msra.mxu0 0
    %862 = vmatpush.bf16.msra.mxu0 0
    %863 = vmatpush.bf16.msra.mxu0 0
    %864 = vmatpush.bf16.msra.mxu0 0
    %865 = vmatpush.bf16.msra.mxu0 0
    %866 = vmatpush.bf16.msra.mxu0 0
    %867 = vmatpush.bf16.msra.mxu0 0
    %868 = vmatpush.bf16.msra.mxu0 %v816
    %869 = vmatmul.bf16.gmra.mxu0 %v856
    %v870 = vpop.f32.mrf.mxu0
    %v871 = vadd.f32 %v828, %v870
    %v872 = vpop.f32.mrf.mxu0
    %v873 = vadd.f32 %v833, %v872
    %874 = vmatmul.bf16.gmra.mxu0 %v859
    %v875 = vpop.f32.mrf.mxu0
    %v876 = vadd.f32 %v838, %v875
    %v877 = vpop.f32.mrf.mxu0
    %v878 = vadd.f32 %v843, %v877
    %879 = vdwg.mxu0
    %v880 = vmax.f32 %v871, 0.0
    %v881 = vmax.f32 %v873, 0.0
    %v882 = vmax.f32 %v876, 0.0
    %v883 = vmax.f32 %v878, 0.0
    %v884 = vld [vmem:[#allocation2] sm:$0xff]
    %v885 = vld [vmem:[#allocation2 + $0x8] sm:$0xff]
    %v886 = vld [vmem:[#allocation2 + $0x10] sm:$0xff]
    %v887 = vld [vmem:[#allocation2 + $0x18] sm:$0xff]
    %v888 = vmax.f32 %v884, %v880
    %v889 = vmax.f32 %v885, %v881
    %v890 = vmax.f32 %v886, %v882
    %v891 = vmax.f32 %v887, %v883
    %892 = vst [vmem:[#allocation2] sm:$0xff] %v888
    %893 = vst [vmem:[#allocation2 + $0x8] sm:$0xff] %v889
    %894 = vst [vmem:[#allocation2 + $0x10] sm:$0xff] %v890
    %895 = vst [vmem:[#allocation2 + $0x18] sm:$0xff] %v891
    %s896 = scalar_lea.vmem %s0, 28
    %v897 = vld [vmem:[%s896] sm:$0xf]
    %v898 = vld [vmem:[%s1] sm:$0xf]
    %v899 = vld [vmem:[%s1 + $0x4] sm:$0xf]
    %v900 = vld [vmem:[%s2] sm:$0xff]
    %v901 = vld [vmem:[%s2 + $0x8] sm:$0xff]
    %903 = vset.pattern.permute.xlu0 0
    %904 = vperm.xlu0 %903, %v900
    %v905 = vpop.permute.xlu0 %904
    %908 = vset.pattern.permute.xlu0 0
    %909 = vperm.xlu0 %908, %v901
    %v910 = vpop.permute.xlu0 %909
    %v914 = vunpack.c.l.b16 %v898
    %v915 = vunpack.c.l.b16 %v899
    %v916 = vpack.c.b16 %v915, %v914
    %v918 = vsel %vm50, %v916, 0
    %v921 = vand.u32 %v897, %v57
    %923 = vmatpush.bf16.msra.mxu0 0
    %924 = vmatpush.bf16.msra.mxu0 0
    %925 = vmatpush.bf16.msra.mxu0 0
    %926 = vmatpush.bf16.msra.mxu0 0
    %927 = vmatpush.bf16.msra.mxu0 0
    %928 = vmatpush.bf16.msra.mxu0 0
    %929 = vmatpush.bf16.msra.mxu0 0
    %930 = vmatpush.bf16.msra.mxu0 %v921
    %931 = vmatmul.bf16.gmra.mxu0 %v918
    %v932 = vpop.f32.mrf.mxu0
    %v933 = vadd.f32 %v905, %v932
    %v934 = vpop.f32.mrf.mxu0
    %v935 = vadd.f32 %v910, %v934
    %936 = vdwg.mxu0
    %v937 = vmax.f32 %v933, 0.0
    %v938 = vmax.f32 %v935, 0.0
    %v939 = vpack.c.bf16 %v938, %v937
    %v940 = vld [vmem:[%s3] sm:$0xf]
    %v941 = vld [vmem:[%s3 + $0x4] sm:$0xf]
    %v942 = vld [vmem:[%s3 + $0x8] sm:$0xf]
    %v943 = vld [vmem:[%s3 + $0xc] sm:$0xf]
    %v944 = vld [vmem:[%s4] sm:$0xff]
    %v945 = vld [vmem:[%s4 + $0x8] sm:$0xff]
    %v946 = vld [vmem:[%s4 + $0x10] sm:$0xff]
    %v947 = vld [vmem:[%s4 + $0x18] sm:$0xff]
    %949 = vset.pattern.permute.xlu0 0
    %950 = vperm.xlu0 %949, %v944
    %v951 = vpop.permute.xlu0 %950
    %954 = vset.pattern.permute.xlu0 0
    %955 = vperm.xlu0 %954, %v945
    %v956 = vpop.permute.xlu0 %955
    %959 = vset.pattern.permute.xlu0 0
    %960 = vperm.xlu0 %959, %v946
    %v961 = vpop.permute.xlu0 %960
    %964 = vset.pattern.permute.xlu0 0
    %965 = vperm.xlu0 %964, %v947
    %v966 = vpop.permute.xlu0 %965
    %v972 = vunpack.c.l.b16 %v940
    %v973 = vunpack.c.l.b16 %v941
    %v974 = vunpack.c.l.b16 %v942
    %v975 = vunpack.c.l.b16 %v943
    %v976 = vpack.c.b16 %v973, %v972
    %v977 = vpack.c.b16 %v975, %v974
    %v979 = vsel %vm116, %v976, 0
    %v982 = vsel %vm116, %v977, 0
    %984 = vmatpush.bf16.msra.mxu0 0
    %985 = vmatpush.bf16.msra.mxu0 0
    %986 = vmatpush.bf16.msra.mxu0 0
    %987 = vmatpush.bf16.msra.mxu0 0
    %988 = vmatpush.bf16.msra.mxu0 0
    %989 = vmatpush.bf16.msra.mxu0 0
    %990 = vmatpush.bf16.msra.mxu0 0
    %991 = vmatpush.bf16.msra.mxu0 %v939
    %992 = vmatmul.bf16.gmra.mxu0 %v979
    %v993 = vpop.f32.mrf.mxu0
    %v994 = vadd.f32 %v951, %v993
    %v995 = vpop.f32.mrf.mxu0
    %v996 = vadd.f32 %v956, %v995
    %997 = vmatmul.bf16.gmra.mxu0 %v982
    %v998 = vpop.f32.mrf.mxu0
    %v999 = vadd.f32 %v961, %v998
    %v1000 = vpop.f32.mrf.mxu0
    %v1001 = vadd.f32 %v966, %v1000
    %1002 = vdwg.mxu0
    %v1003 = vmax.f32 %v994, 0.0
    %v1004 = vmax.f32 %v996, 0.0
    %v1005 = vmax.f32 %v999, 0.0
    %v1006 = vmax.f32 %v1001, 0.0
    %v1007 = vld [vmem:[#allocation2] sm:$0xff]
    %v1008 = vld [vmem:[#allocation2 + $0x8] sm:$0xff]
    %v1009 = vld [vmem:[#allocation2 + $0x10] sm:$0xff]
    %v1010 = vld [vmem:[#allocation2 + $0x18] sm:$0xff]
    %v1011 = vmax.f32 %v1007, %v1003
    %v1012 = vmax.f32 %v1008, %v1004
    %v1013 = vmax.f32 %v1009, %v1005
    %v1014 = vmax.f32 %v1010, %v1006
    %1015 = vst [vmem:[#allocation2] sm:$0xff] %v1011
    %1016 = vst [vmem:[#allocation2 + $0x8] sm:$0xff] %v1012
    %1017 = vst [vmem:[#allocation2 + $0x10] sm:$0xff] %v1013
    %1018 = vst [vmem:[#allocation2 + $0x18] sm:$0xff] %v1014
    // Predicated region
    $region26: #{tpu_custom_call.1} parent=1 // pred_check
      %p1019 = pneg %p22
    $region27: #{tpu_custom_call.1} parent=1 // pred_check_branch
      %1021 = sbr.rel (%p1019) target = $region29
    $region28: #{tpu_custom_call.1} parent=1 // pred_region
      %v1022 = vld [vmem:[#allocation2] sm:$0xff]
      %v1023 = vld [vmem:[#allocation2 + $0x8] sm:$0xff]
      %v1024 = vld [vmem:[#allocation2 + $0x10] sm:$0xff]
      %v1025 = vld [vmem:[#allocation2 + $0x18] sm:$0xff]
      %1026 = vst [vmem:[#allocation3] sm:$0xff] %v1022
      %1027 = vst [vmem:[#allocation3 + $0x8] sm:$0xff] %v1023
      %1028 = vst [vmem:[#allocation3 + $0x10] sm:$0xff] %v1024
      %1029 = vst [vmem:[#allocation3 + $0x18] sm:$0xff] %v1025
    $region29: #{tpu_custom_call.1} parent=1 // pred_fallthru
      _
    // Predicated region
    $region30: #{tpu_custom_call.1} parent=1 // pred_check
      _
    $region31: #{tpu_custom_call.1} parent=1 // pred_check_branch
      %1031 = sbr.rel (0) target = $region33
    $region32: #{tpu_custom_call.1} parent=1 // pred_region
      %1033 = vsyncadd [#allocation4], 0
      %s1034 = sshll.u32 [#allocation3], 4
      %s1035 = int_to_ptr.vmem [resolvable:$true] %s1034
      %s1036 = sshll.u32 %s5, 4
      %s1037 = int_to_ptr.hbm [resolvable:$true] %s1036
      %1042 = dma.vmem_to_hbm [thread:$0]  %s1035, 512, %s1037, [#allocation4], 128, 128, 8
    $region33: #{tpu_custom_call.1} parent=1 // pred_fallthru
      _
    // Predicated region
    $region34: #{tpu_custom_call.1} parent=1 // pred_check
      _
    $region35: #{tpu_custom_call.1} parent=1 // pred_check_branch
      %1044 = sbr.rel (0) target = $region37
    $region36: #{tpu_custom_call.1} parent=1 // pred_region
      %1046 = dma.done [#allocation4], 512
    $region37: #{tpu_custom_call.1} parent=1 // pred_fallthru
      _
    %1047 = vsyncpa [#allocation4], 1

</llo_original>
